<compile_context>
chip_gen: v7x
topology: tpu7x:2x2x1
jax: 0.10.0
libtpu: 0.0.40
codegen_flags: <defaults>
</compile_context>

<pallas_src>
import functools

import jax
import jax.numpy as jnp
from jax.experimental import pallas as pl
from jax.experimental.pallas import tpu as pltpu

LANES = 128      # TPU lane width; conv outputs are padded to this for dense vst
TM_MAX = 512     # row-tile upper bound (256-512 ~ 85% of HBM roofline)


def _round_up(n, m):
    return ((n + m - 1) // m) * m


# ----------------------------- Pallas kernel ------------------------------- #

def _conv_relu_pool_kernel(x_ref, w_ref, b_ref, o_ref):
    """One row-tile of conv-as-matmul + 2x2 max-pool + bias + ReLU.

    x_ref: (4*TM, K) bf16  im2col patches; rows [w*TM:(w+1)*TM] are pool offset w
    w_ref: (K, Cp)   bf16  conv weights, Cout zero-padded to 128 lanes
    b_ref: (1, Cp)   f32   bias, zero-padded to 128 lanes
    o_ref: (TM, Cp)  out   pooled/activated tile (bf16 or f32)
    """
    TM = o_ref.shape[0]
    # Single MXU matmul with M = 4*TM (all 4 pool-window offsets at once).
    y = jnp.dot(x_ref[...], w_ref[...], preferred_element_type=jnp.float32)
    # 2x2 max-pool = elementwise max of the 4 tile-aligned row slabs (VPU).
    # ReLU is monotone and the bias is offset-invariant, so max first is exact.
    p = jnp.maximum(jnp.maximum(y[0 * TM:1 * TM], y[1 * TM:2 * TM]),
                    jnp.maximum(y[2 * TM:3 * TM], y[3 * TM:4 * TM]))
    p = jnp.maximum(p + b_ref[...], 0.0)            # bias + ReLU in f32
    o_ref[...] = p.astype(o_ref.dtype)              # single cast on final store


# ------------------------------ layer wrapper ------------------------------ #

def conv_relu_pool(x_nhwc, w_oihw, b, k, out_dtype):
    """Conv2d(Cin->Cout, k, stride=1, padding=k//2) + ReLU + MaxPool2d(2).

    x_nhwc: (B, H, W, Cin) with even H, W.  Returns (B, H//2, W//2, Cout).
    w_oihw: PyTorch conv weight (Cout, Cin, k, k); b: (Cout,).
    """
    B, H, W, Cin = x_nhwc.shape
    Cout = w_oihw.shape[0]
    assert H % 2 == 0 and W % 2 == 0, "MaxPool2d(2) requires even H, W"
    Ho, Wo = H // 2, W // 2
    pad = k // 2
    K = k * k * Cin
    Cp = _round_up(Cout, LANES)
    Q = B * Ho * Wo

    # --- XLA glue: im2col patches in pool-offset-major order -> (4, Q, K) bf16.
    # TODO(synk): move this in-kernel (shifted sublane reads over a resident
    # NHWC tile) to avoid the k^2-expanded HBM slab at large batch.
    xp = jnp.pad(x_nhwc, ((0, 0), (pad, pad), (pad, pad), (0, 0)))
    patches = jnp.stack(
        [xp[:, ky:ky + H, kx:kx + W, :] for ky in range(k) for kx in range(k)],
        axis=3)                                              # (B, H, W, k*k, Cin)
    patches = patches.reshape(B, Ho, 2, Wo, 2, k * k, Cin)
    patches = jnp.transpose(patches, (2, 4, 0, 1, 3, 5, 6))  # (2,2,B,Ho,Wo,kk,Cin)
    x_col = patches.reshape(4, Q, K).astype(jnp.bfloat16)

    # Row tile: at least 2 tiles so the parallel axis can shard across v7x's
    # two TensorCores; multiple of 16 keeps bf16 sublane tiling clean.
    TM = min(TM_MAX, _round_up(pl.cdiv(Q, 2), 16))
    Qp = _round_up(Q, TM)
    nq = Qp // TM
    if Qp != Q:
        x_col = jnp.pad(x_col, ((0, 0), (0, Qp - Q), (0, 0)))

    # Interleave pool offsets per row-tile so each kernel step reads one
    # contiguous (4*TM, K) slab: row = q*4*TM + w*TM + t.
    x_col = x_col.reshape(4, nq, TM, K).transpose(1, 0, 2, 3).reshape(nq * 4 * TM, K)

    # --- weights: OIHW -> (ky, kx, cin, cout) matrix, lane-padded to Cp.
    w_mat = jnp.transpose(w_oihw, (2, 3, 1, 0)).reshape(K, Cout)
    w_mat = jnp.pad(w_mat, ((0, 0), (0, Cp - Cout))).astype(jnp.bfloat16)
    b_row = jnp.pad(b, (0, Cp - Cout)).reshape(1, Cp).astype(jnp.float32)

    out = pl.pallas_call(
        _conv_relu_pool_kernel,
        out_shape=jax.ShapeDtypeStruct((Qp, Cp), out_dtype),
        grid=(nq,),
        in_specs=[
            pl.BlockSpec((4 * TM, K), lambda q: (q, 0)),   # streamed patch slab
            pl.BlockSpec((K, Cp), lambda q: (0, 0)),       # resident weights
            pl.BlockSpec((1, Cp), lambda q: (0, 0)),       # resident bias
        ],
        out_specs=pl.BlockSpec((TM, Cp), lambda q: (q, 0)),
        compiler_params=pltpu.CompilerParams(
            dimension_semantics=("parallel",),
            vmem_limit_bytes=32 * 1024 * 1024,             # safe on v7x (64 MiB)
        ),
    )(x_col, w_mat, b_row)

    return out[:Q, :Cout].reshape(B, Ho, Wo, Cout)


# ------------------------------ full forward ------------------------------- #

def cnn_forward(x_nchw, params, k):
    B = x_nchw.shape[0]
    x = jnp.transpose(x_nchw, (0, 2, 3, 1))                  # NCHW -> NHWC
    # Layer-1 output emitted bf16 (next layer feeds the MXU in bf16 anyway).
    x = conv_relu_pool(x, params["w1"], params["b1"], k,
                       out_dtype=jnp.bfloat16)               # (B, 14, 14, 16)
    # Layer-2 output stays f32 for the f32 classifier GEMM.
    x = conv_relu_pool(x, params["w2"], params["b2"], k,
                       out_dtype=jnp.float32)                # (B,  7,  7, 32)
    # match torch x.view(B, -1) on NCHW tensors: flatten in (C, H, W) order
    feat = jnp.transpose(x, (0, 3, 1, 2)).reshape(B, -1)     # (B, 32*7*7)
    # Classifier left as a plain XLA GEMM (tiny 2x1568x10; a separate
    # pallas_call here is pure dispatch/DMA overhead).
    return feat @ params["w_out"].T + params["b_out"]        # (B, 10)


def init_params(key, k):
    k1, k2, k3 = jax.random.split(key, 3)
    # PyTorch layouts: conv weight (Cout, Cin, k, k); linear weight (out, in).
    w1 = jax.random.normal(k1, (16, 1, k, k), jnp.float32) * (1.0 / (k * k)) ** 0.5
    b1 = jnp.zeros((16,), jnp.float32)
    w2 = jax.random.normal(k2, (32, 16, k, k), jnp.float32) * (1.0 / (16 * k * k)) ** 0.5
    b2 = jnp.zeros((32,), jnp.float32)
    w_out = jax.random.normal(k3, (10, 32 * 7 * 7), jnp.float32) * (1.0 / (32 * 7 * 7)) ** 0.5
    b_out = jnp.zeros((10,), jnp.float32)
    return {"w1": w1, "b1": b1, "w2": w2, "b2": b2, "w_out": w_out, "b_out": b_out}


if __name__ == "__main__":
    kernel_size = 5              # CNN(kernel_size=5); odd k keeps "same" spatial size
    batch = 2                    # Linear(32*7*7, 10) forces 28x28 inputs
    key = jax.random.PRNGKey(0)
    pkey, xkey = jax.random.split(key)

    params = init_params(pkey, kernel_size)
    x = jax.random.normal(xkey, (batch, 1, 28, 28), jnp.float32)  # NCHW like PyTorch

    fwd = jax.jit(functools.partial(cnn_forward, k=kernel_size))
    out = jax.block_until_ready(fwd(x, params))
    assert out.shape == (batch, 10) and out.dtype == jnp.float32
    assert bool(jnp.all(jnp.isfinite(out)))
    print("KERNEL_OK")
</pallas_src>

<mosaic_0001>
module attributes {stable_mosaic.version = 11 : i64} {
  func.func @_conv_relu_pool_kernel(%arg0: i32, %arg1: memref<832x25xbf16, #tpu.memory_space<vmem>>, %arg2: memref<25x128xbf16, #tpu.memory_space<vmem>>, %arg3: memref<1x128xf32, #tpu.memory_space<vmem>>, %arg4: memref<208x128xbf16, #tpu.memory_space<vmem>>) attributes {dimension_semantics = [#tpu.dimension_semantics<parallel>], iteration_bounds = array<i64: 2>, scalar_prefetch = 0 : i64, scratch_operands = 0 : i64, tpu.core_type = #tpu.core_type<tc>, window_params = [{transform_indices = @transform_0, window_bounds = array<i64: 832, 25>}, {pipeline_mode = #tpu.pipeline_mode<synchronous>, transform_indices = @transform_1, window_bounds = array<i64: 25, 128>}, {pipeline_mode = #tpu.pipeline_mode<synchronous>, transform_indices = @transform_2, window_bounds = array<i64: 1, 128>}, {transform_indices = @transform_3, window_bounds = array<i64: 208, 128>}]} {
    %c0 = arith.constant 0 : index
    %c0_0 = arith.constant 0 : index
    %0 = vector.load %arg1[%c0, %c0_0] : memref<832x25xbf16, #tpu.memory_space<vmem>>, vector<832x25xbf16>
    %c0_1 = arith.constant 0 : index
    %c0_2 = arith.constant 0 : index
    %1 = vector.load %arg2[%c0_1, %c0_2] : memref<25x128xbf16, #tpu.memory_space<vmem>>, vector<25x128xbf16>
    %cst = arith.constant dense<0.000000e+00> : vector<832x128xf32>
    %2 = tpu.matmul %0, %1, %cst {dimension_numbers = #tpu.dot_dimension_numbers<[1], [0], [0], [1], [0, 0, 1, 1], [], []>} : vector<832x25xbf16>, vector<25x128xbf16>, vector<832x128xf32> -> vector<832x128xf32>
    %3 = vector.extract_strided_slice %2 {offsets = [0, 0], sizes = [208, 128], strides = [1, 1]} : vector<832x128xf32> to vector<208x128xf32>
    %4 = vector.extract_strided_slice %2 {offsets = [208, 0], sizes = [208, 128], strides = [1, 1]} : vector<832x128xf32> to vector<208x128xf32>
    %5 = arith.maximumf %3, %4 : vector<208x128xf32>
    %6 = vector.extract_strided_slice %2 {offsets = [416, 0], sizes = [208, 128], strides = [1, 1]} : vector<832x128xf32> to vector<208x128xf32>
    %7 = vector.extract_strided_slice %2 {offsets = [624, 0], sizes = [208, 128], strides = [1, 1]} : vector<832x128xf32> to vector<208x128xf32>
    %8 = arith.maximumf %6, %7 : vector<208x128xf32>
    %9 = arith.maximumf %5, %8 : vector<208x128xf32>
    %c0_3 = arith.constant 0 : index
    %c0_4 = arith.constant 0 : index
    %10 = vector.load %arg3[%c0_3, %c0_4] : memref<1x128xf32, #tpu.memory_space<vmem>>, vector<1x128xf32>
    %11 = vector.broadcast %10 : vector<1x128xf32> to vector<208x128xf32>
    %12 = arith.addf %9, %11 : vector<208x128xf32>
    %cst_5 = arith.constant 0.000000e+00 : f32
    %13 = vector.broadcast %cst_5 : f32 to vector<208x128xf32>
    %14 = arith.maximumf %12, %13 : vector<208x128xf32>
    %15 = arith.truncf %14 : vector<208x128xf32> to vector<208x128xbf16>
    %c0_6 = arith.constant 0 : index
    %c0_7 = arith.constant 0 : index
    %16 = vector.load %arg4[%c0_6, %c0_7] : memref<208x128xbf16, #tpu.memory_space<vmem>>, vector<208x128xbf16>
    tpu.vector_store %arg4[%c0_6, %c0_7], %15 {strides = array<i32>} : memref<208x128xbf16, #tpu.memory_space<vmem>>, vector<208x128xbf16>,
    return
  }
  func.func @transform_0(%arg0: i32) -> (i32, i32) {
    %c0_i32 = arith.constant 0 : i32
    %c0_i32_0 = arith.constant 0 : i32
    return %arg0, %c0_i32 : i32, i32
  }
  func.func @transform_1(%arg0: i32) -> (i32, i32) {
    %c0_i32 = arith.constant 0 : i32
    %c0_i32_0 = arith.constant 0 : i32
    %c0_i32_1 = arith.constant 0 : i32
    return %c0_i32, %c0_i32_0 : i32, i32
  }
  func.func @transform_2(%arg0: i32) -> (i32, i32) {
    %c0_i32 = arith.constant 0 : i32
    %c0_i32_0 = arith.constant 0 : i32
    %c0_i32_1 = arith.constant 0 : i32
    return %c0_i32, %c0_i32_0 : i32, i32
  }
  func.func @transform_3(%arg0: i32) -> (i32, i32) {
    %c0_i32 = arith.constant 0 : i32
    %c0_i32_0 = arith.constant 0 : i32
    return %arg0, %c0_i32 : i32, i32
  }
}

module attributes {stable_mosaic.version = 11 : i64} {
  func.func @_conv_relu_pool_kernel(%arg0: i32, %arg1: memref<256x400xbf16, #tpu.memory_space<vmem>>, %arg2: memref<400x128xbf16, #tpu.memory_space<vmem>>, %arg3: memref<1x128xf32, #tpu.memory_space<vmem>>, %arg4: memref<64x128xf32, #tpu.memory_space<vmem>>) attributes {dimension_semantics = [#tpu.dimension_semantics<parallel>], iteration_bounds = array<i64: 2>, scalar_prefetch = 0 : i64, scratch_operands = 0 : i64, tpu.core_type = #tpu.core_type<tc>, window_params = [{transform_indices = @transform_0, window_bounds = array<i64: 256, 400>}, {pipeline_mode = #tpu.pipeline_mode<synchronous>, transform_indices = @transform_1, window_bounds = array<i64: 400, 128>}, {pipeline_mode = #tpu.pipeline_mode<synchronous>, transform_indices = @transform_2, window_bounds = array<i64: 1, 128>}, {transform_indices = @transform_3, window_bounds = array<i64: 64, 128>}]} {
    %c0 = arith.constant 0 : index
    %c0_0 = arith.constant 0 : index
    %0 = vector.load %arg1[%c0, %c0_0] : memref<256x400xbf16, #tpu.memory_space<vmem>>, vector<256x400xbf16>
    %c0_1 = arith.constant 0 : index
    %c0_2 = arith.constant 0 : index
    %1 = vector.load %arg2[%c0_1, %c0_2] : memref<400x128xbf16, #tpu.memory_space<vmem>>, vector<400x128xbf16>
    %cst = arith.constant dense<0.000000e+00> : vector<256x128xf32>
    %2 = tpu.matmul %0, %1, %cst {dimension_numbers = #tpu.dot_dimension_numbers<[1], [0], [0], [1], [0, 0, 1, 1], [], []>} : vector<256x400xbf16>, vector<400x128xbf16>, vector<256x128xf32> -> vector<256x128xf32>
    %3 = vector.extract_strided_slice %2 {offsets = [0, 0], sizes = [64, 128], strides = [1, 1]} : vector<256x128xf32> to vector<64x128xf32>
    %4 = vector.extract_strided_slice %2 {offsets = [64, 0], sizes = [64, 128], strides = [1, 1]} : vector<256x128xf32> to vector<64x128xf32>
    %5 = arith.maximumf %3, %4 : vector<64x128xf32>
    %6 = vector.extract_strided_slice %2 {offsets = [128, 0], sizes = [64, 128], strides = [1, 1]} : vector<256x128xf32> to vector<64x128xf32>
    %7 = vector.extract_strided_slice %2 {offsets = [192, 0], sizes = [64, 128], strides = [1, 1]} : vector<256x128xf32> to vector<64x128xf32>
    %8 = arith.maximumf %6, %7 : vector<64x128xf32>
    %9 = arith.maximumf %5, %8 : vector<64x128xf32>
    %c0_3 = arith.constant 0 : index
    %c0_4 = arith.constant 0 : index
    %10 = vector.load %arg3[%c0_3, %c0_4] : memref<1x128xf32, #tpu.memory_space<vmem>>, vector<1x128xf32>
    %11 = vector.broadcast %10 : vector<1x128xf32> to vector<64x128xf32>
    %12 = arith.addf %9, %11 : vector<64x128xf32>
    %cst_5 = arith.constant 0.000000e+00 : f32
    %13 = vector.broadcast %cst_5 : f32 to vector<64x128xf32>
    %14 = arith.maximumf %12, %13 : vector<64x128xf32>
    %c0_6 = arith.constant 0 : index
    %c0_7 = arith.constant 0 : index
    %15 = vector.load %arg4[%c0_6, %c0_7] : memref<64x128xf32, #tpu.memory_space<vmem>>, vector<64x128xf32>
    tpu.vector_store %arg4[%c0_6, %c0_7], %14 {strides = array<i32>} : memref<64x128xf32, #tpu.memory_space<vmem>>, vector<64x128xf32>,
    return
  }
  func.func @transform_0(%arg0: i32) -> (i32, i32) {
    %c0_i32 = arith.constant 0 : i32
    %c0_i32_0 = arith.constant 0 : i32
    return %arg0, %c0_i32 : i32, i32
  }
  func.func @transform_1(%arg0: i32) -> (i32, i32) {
    %c0_i32 = arith.constant 0 : i32
    %c0_i32_0 = arith.constant 0 : i32
    %c0_i32_1 = arith.constant 0 : i32
    return %c0_i32, %c0_i32_0 : i32, i32
  }
  func.func @transform_2(%arg0: i32) -> (i32, i32) {
    %c0_i32 = arith.constant 0 : i32
    %c0_i32_0 = arith.constant 0 : i32
    %c0_i32_1 = arith.constant 0 : i32
    return %c0_i32, %c0_i32_0 : i32, i32
  }
  func.func @transform_3(%arg0: i32) -> (i32, i32) {
    %c0_i32 = arith.constant 0 : i32
    %c0_i32_0 = arith.constant 0 : i32
    return %arg0, %c0_i32 : i32, i32
  }
}

</mosaic_0001>

<llo_original>
// kernel: cnn_forward.2
$region0: #{cnn_forward.2}
  #allocation0 [shape = 'u32[]', space=smem, size = 0x4, offset = 0x4, fixed_abs, tag = 'smem constant byte address 0x4 - core index']
  #allocation1 [shape = 'u32[144,128]{1,0:T(1,128)}', space=vmem, size = 0x12000, scoped, tag = 'internal scratch']
  %s0 = inlined_call_operand.vmem [shape: bf16[1664,25], index: 0, kind: input, shape index: {}]
  %s1 = inlined_call_operand.vmem [shape: bf16[25,128], index: 1, kind: input, shape index: {}]
  %s2 = inlined_call_operand.vmem [shape: f32[1,128], index: 2, kind: input, shape index: {}]
  %s3 = inlined_call_operand.vmem [shape: bf16[416,128], index: 3, kind: output, shape index: {}]
  %s4 = sld [smem:[#allocation0]]
  $region45: #{cnn_forward.2} parent=0
    _
  %s6 = ssub.s32 1, %s4
  %s7 = scalar_select 0, %s6, %s4
  loop: start=0, step=1, limit=4
  $region2: #{cnn_forward.2} parent=0 // loop_pre_header
    _
  $region3: #{cnn_forward.2} parent=0 // loop_header
    %s9 = sphi 0, %s13
    %p10 = scmp.ge.s32.totalorder %s9, 4
    %s19 = sphi 0, %s21
    %s22 = sphi 0, %s19
    %s23 = sphi 0, %s22
    %s39 = sphi 0, %s23
    %s43 = sphi 0, %s43
    %s45 = sphi 0, %s43
    %s46 = sphi 0, %s45
    %s60 = sphi 0, %s46
    %s64 = sphi 0, %s64
    %s66 = sphi 0, %s64
    %s67 = sphi 0, %s66
    %s81 = sphi 0, %s67
    %s87 = sphi 0, %s89
    %s90 = sphi 0, %s87
    %s91 = sphi 0, %s90
    %s107 = sphi 0, %s91
  $region4: #{cnn_forward.2} parent=0 // loop_header_branch
    %12 = sbr.rel (%p10) target = $region8
  $region5: #{cnn_forward.2} parent=0 // loop_body
    %s14 = ssub.s32 %s9, 1
    %s15 = ssub.s32 %s9, 2
    %s16 = sadd.s32 %s9, 1
    %s17 = ssub.s32 %s9, %s16
    %p18 = scmp.eq.s32.totalorder %s17, 0
    %s20 = sadd.s32 %s19, 1
    %s21 = scalar_select %p18, %s19, %s20
    %p24 = pneg %p18
    %p25 = scmp.eq.s32.totalorder %s9, 1
    %p26 = por %p24, %p25
    %p27 = scmp.ne.s32.totalorder %s19, %s22
    %p28 = scmp.eq.s32.totalorder %s9, 0
    %p29 = por %p27, %p28
    %p30 = scmp.ne.s32.totalorder %s19, %s22
    %p31 = scmp.eq.s32.totalorder %s14, 1
    %p32 = por %p30, %p31
    %p33 = scmp.ne.s32.totalorder %s22, %s23
    %p34 = scmp.eq.s32.totalorder %s14, 0
    %p35 = por %p33, %p34
    %p36 = scmp.ne.s32.totalorder %s22, %s23
    %p37 = scmp.eq.s32.totalorder %s15, 1
    %p38 = por %p36, %p37
    %p40 = scmp.ne.s32.totalorder %s23, %s39
    %p41 = scmp.eq.s32.totalorder %s15, 0
    %p42 = por %p40, %p41
    %s44 = sadd.s32 %s43, 1
    %p47 = scmp.eq.s32.totalorder %s9, 1
    %p48 = scmp.ne.s32.totalorder %s43, %s45
    %p49 = scmp.eq.s32.totalorder %s9, 0
    %p50 = por %p48, %p49
    %p51 = scmp.ne.s32.totalorder %s43, %s45
    %p52 = scmp.eq.s32.totalorder %s14, 1
    %p53 = por %p51, %p52
    %p54 = scmp.ne.s32.totalorder %s45, %s46
    %p55 = scmp.eq.s32.totalorder %s14, 0
    %p56 = por %p54, %p55
    %p57 = scmp.ne.s32.totalorder %s45, %s46
    %p58 = scmp.eq.s32.totalorder %s15, 1
    %p59 = por %p57, %p58
    %p61 = scmp.ne.s32.totalorder %s46, %s60
    %p62 = scmp.eq.s32.totalorder %s15, 0
    %p63 = por %p61, %p62
    %s65 = sadd.s32 %s64, 1
    %p68 = scmp.eq.s32.totalorder %s9, 1
    %p69 = scmp.ne.s32.totalorder %s64, %s66
    %p70 = scmp.eq.s32.totalorder %s9, 0
    %p71 = por %p69, %p70
    %p72 = scmp.ne.s32.totalorder %s64, %s66
    %p73 = scmp.eq.s32.totalorder %s14, 1
    %p74 = por %p72, %p73
    %p75 = scmp.ne.s32.totalorder %s66, %s67
    %p76 = scmp.eq.s32.totalorder %s14, 0
    %p77 = por %p75, %p76
    %p78 = scmp.ne.s32.totalorder %s66, %s67
    %p79 = scmp.eq.s32.totalorder %s15, 1
    %p80 = por %p78, %p79
    %p82 = scmp.ne.s32.totalorder %s67, %s81
    %p83 = scmp.eq.s32.totalorder %s15, 0
    %p84 = por %p82, %p83
    %s85 = ssub.s32 %s9, %s16
    %p86 = scmp.eq.s32.totalorder %s85, 0
    %s88 = sadd.s32 %s87, 1
    %s89 = scalar_select %p86, %s87, %s88
    %p92 = pneg %p86
    %p93 = scmp.eq.s32.totalorder %s9, 1
    %p94 = por %p92, %p93
    %p95 = scmp.ne.s32.totalorder %s87, %s90
    %p96 = scmp.eq.s32.totalorder %s9, 0
    %p97 = por %p95, %p96
    %p98 = scmp.ne.s32.totalorder %s87, %s90
    %p99 = scmp.eq.s32.totalorder %s14, 1
    %p100 = por %p98, %p99
    %p101 = scmp.ne.s32.totalorder %s90, %s91
    %p102 = scmp.eq.s32.totalorder %s14, 0
    %p103 = por %p101, %p102
    %p104 = scmp.ne.s32.totalorder %s90, %s91
    %p105 = scmp.eq.s32.totalorder %s15, 1
    %p106 = por %p104, %p105
    %p108 = scmp.ne.s32.totalorder %s91, %s107
    %p109 = scmp.eq.s32.totalorder %s15, 0
    %p110 = por %p108, %p109
    %p111 = scmp.le.s32.totalorder 1, %s9
    %p112 = scmp.lt.s32.totalorder %s9, 3
    %p113 = pnand %p111, %p112
    %p114 = pneg %p113
    // Predicated region
    $region9: #{cnn_forward.2} parent=5 // pred_check
      _
    $region10: #{cnn_forward.2} parent=5 // pred_check_branch
      %116 = sbr.rel (%p113) target = $region12
    $region11: #{cnn_forward.2} parent=5 // pred_region
      %s117 = ssub.s32 %s9, 1
      // Predicated region
      $region13: #{cnn_forward.2} parent=11 // pred_check
        %p118 = pneg %p56
      $region14: #{cnn_forward.2} parent=11 // pred_check_branch
        %120 = sbr.rel (%p118) target = $region16
      $region15: #{cnn_forward.2} parent=11 // pred_region
        _
      $region16: #{cnn_forward.2} parent=11 // pred_fallthru
        _
      // Predicated region
      $region17: #{cnn_forward.2} parent=11 // pred_check
        %p121 = pneg %p77
      $region18: #{cnn_forward.2} parent=11 // pred_check_branch
        %123 = sbr.rel (%p121) target = $region20
      $region19: #{cnn_forward.2} parent=11 // pred_region
        _
      $region20: #{cnn_forward.2} parent=11 // pred_fallthru
        _
    $region12: #{cnn_forward.2} parent=5 // pred_fallthru
      _
    %p124 = scmp.lt.s32.totalorder %s9, 2
    // Predicated region
    $region21: #{cnn_forward.2} parent=5 // pred_check
      %p125 = pneg %p124
    $region22: #{cnn_forward.2} parent=5 // pred_check_branch
      %127 = sbr.rel (%p125) target = $region24
    $region23: #{cnn_forward.2} parent=5 // pred_region
      // Predicated region
      $region25: #{cnn_forward.2} parent=23 // pred_check
        %p128 = pneg %p29
      $region26: #{cnn_forward.2} parent=23 // pred_check_branch
        %130 = sbr.rel (%p128) target = $region28
      $region27: #{cnn_forward.2} parent=23 // pred_region
        %s131 = smul.u32 104, %s9
        %p132 = scmp.lt.s32.totalorder %s131, 207
        %s133 = scalar_select %p132, %s131, 207
        %s134 = smul.addr %s133, 4
        %s135 = scalar_lea.vmem %s0, %s134
        %s136 = smul.u32 104, %s9
      $region28: #{cnn_forward.2} parent=23 // pred_fallthru
        _
    $region24: #{cnn_forward.2} parent=5 // pred_fallthru
      _
    %p137 = scmp.le.s32.totalorder 1, %s9
    %p138 = scmp.lt.s32.totalorder %s9, 3
    %p139 = pnand %p137, %p138
    %p140 = pneg %p139
    // Predicated region
    $region29: #{cnn_forward.2} parent=5 // pred_check
      _
    $region30: #{cnn_forward.2} parent=5 // pred_check_branch
      %142 = sbr.rel (%p139) target = $region32
    $region31: #{cnn_forward.2} parent=5 // pred_region
      %s143 = ssub.s32 %s9, 1
      %s144 = smul.u32 104, %s14
      %p145 = scmp.lt.s32.totalorder %s144, 207
      %s146 = scalar_select %p145, %s144, 207
      %s147 = smul.addr %s146, 4
      %s148 = scalar_lea.vmem %s0, %s147
      %p149 = pneg %p35
      %p150 = pneg %p32
      %p151 = pneg %p56
      %p152 = pneg %p53
      %p153 = pneg %p77
      %p154 = pneg %p74
      %p155 = pneg %p103
      %p156 = pneg %p100
      %s157 = smul.u32 26, %s14
      %p158 = scmp.lt.s32.totalorder %s157, 51
      %s159 = scalar_select %p158, %s157, 51
      %s160 = smul.addr %s159, 4
      %s161 = scalar_lea.vmem %s3, %s160
      %s162 = smul.u32 104, %s14
      %p163 = scmp.lt.s32.totalorder %s162, 207
      %s164 = scalar_select %p163, %s162, 207
      %s165 = smul.addr %s164, 4
      %s166 = scalar_lea.vmem %s0, %s165
      %s167 = smul.u32 104, %s14
      %s168 = smul.u32 26, %s14
      %p169 = scmp.lt.s32.totalorder %s168, 51
      %s170 = scalar_select %p169, %s168, 51
      %s171 = smul.addr %s170, 4
      %s172 = scalar_lea.vmem %s3, %s171
      %s173 = smul.u32 26, %s14
      %v175 = vld [vmem:[%s166] sm:$0xf]
      %v176 = vld [vmem:[%s166 + $0x4] sm:$0xf]
      %v177 = vld [vmem:[%s166 + $0x8] sm:$0xf]
      %v178 = vld [vmem:[%s166 + $0xc] sm:$0xf]
      %v179 = vld [vmem:[%s166 + $0x10] sm:$0xf]
      %v180 = vld [vmem:[%s166 + $0x14] sm:$0xf]
      %v181 = vld [vmem:[%s166 + $0x18] sm:$0xf]
      %v182 = vld [vmem:[%s166 + $0x1c] sm:$0xf]
      %v183 = vld [vmem:[%s166 + $0x20] sm:$0xf]
      %v184 = vld [vmem:[%s166 + $0x24] sm:$0xf]
      %v185 = vld [vmem:[%s166 + $0x28] sm:$0xf]
      %v186 = vld [vmem:[%s166 + $0x2c] sm:$0xf]
      %v187 = vld [vmem:[%s166 + $0x30] sm:$0xf]
      %v188 = vld [vmem:[%s166 + $0x34] sm:$0xf]
      %v189 = vld [vmem:[%s166 + $0x38] sm:$0xf]
      %v190 = vld [vmem:[%s166 + $0x3c] sm:$0xf]
      %v191 = vld [vmem:[%s166 + $0x40] sm:$0xf]
      %v192 = vld [vmem:[%s166 + $0x44] sm:$0xf]
      %v193 = vld [vmem:[%s166 + $0x48] sm:$0xf]
      %v194 = vld [vmem:[%s166 + $0x4c] sm:$0xf]
      %v195 = vld [vmem:[%s166 + $0x50] sm:$0xf]
      %v196 = vld [vmem:[%s166 + $0x54] sm:$0xf]
      %v197 = vld [vmem:[%s166 + $0x58] sm:$0xf]
      %v198 = vld [vmem:[%s166 + $0x5c] sm:$0xf]
      %v199 = vld [vmem:[%s166 + $0x60] sm:$0xf]
      %v200 = vld [vmem:[%s166 + $0x64] sm:$0xf]
      %v201 = vld [vmem:[%s166 + $0x68] sm:$0xf]
      %v202 = vld [vmem:[%s166 + $0x6c] sm:$0xf]
      %v203 = vld [vmem:[%s166 + $0x70] sm:$0xf]
      %v204 = vld [vmem:[%s166 + $0x74] sm:$0xf]
      %v205 = vld [vmem:[%s166 + $0x78] sm:$0xf]
      %v206 = vld [vmem:[%s166 + $0x7c] sm:$0xf]
      %v207 = vld [vmem:[%s166 + $0x80] sm:$0xf]
      %v208 = vld [vmem:[%s166 + $0x84] sm:$0xf]
      %v209 = vld [vmem:[%s166 + $0x88] sm:$0xf]
      %v210 = vld [vmem:[%s166 + $0x8c] sm:$0xf]
      %v211 = vld [vmem:[%s166 + $0x90] sm:$0xf]
      %v212 = vld [vmem:[%s166 + $0x94] sm:$0xf]
      %v213 = vld [vmem:[%s166 + $0x98] sm:$0xf]
      %v214 = vld [vmem:[%s166 + $0x9c] sm:$0xf]
      %v215 = vld [vmem:[%s166 + $0xa0] sm:$0xf]
      %v216 = vld [vmem:[%s166 + $0xa4] sm:$0xf]
      %v217 = vld [vmem:[%s166 + $0xa8] sm:$0xf]
      %v218 = vld [vmem:[%s166 + $0xac] sm:$0xf]
      %v219 = vld [vmem:[%s166 + $0xb0] sm:$0xf]
      %v220 = vld [vmem:[%s166 + $0xb4] sm:$0xf]
      %v221 = vld [vmem:[%s166 + $0xb8] sm:$0xf]
      %v222 = vld [vmem:[%s166 + $0xbc] sm:$0xf]
      %v223 = vld [vmem:[%s166 + $0xc0] sm:$0xf]
      %v224 = vld [vmem:[%s166 + $0xc4] sm:$0xf]
      %v225 = vld [vmem:[%s166 + $0xc8] sm:$0xf]
      %v226 = vld [vmem:[%s166 + $0xcc] sm:$0xf]
      %v227 = vld [vmem:[%s166 + $0xd0] sm:$0xf]
      %v228 = vld [vmem:[%s166 + $0xd4] sm:$0xf]
      %v229 = vld [vmem:[%s166 + $0xd8] sm:$0xf]
      %v230 = vld [vmem:[%s166 + $0xdc] sm:$0xf]
      %v231 = vld [vmem:[%s166 + $0xe0] sm:$0xf]
      %v232 = vld [vmem:[%s166 + $0xe4] sm:$0xf]
      %v233 = vld [vmem:[%s166 + $0xe8] sm:$0xf]
      %v234 = vld [vmem:[%s166 + $0xec] sm:$0xf]
      %v235 = vld [vmem:[%s166 + $0xf0] sm:$0xf]
      %v236 = vld [vmem:[%s166 + $0xf4] sm:$0xf]
      %v237 = vld [vmem:[%s166 + $0xf8] sm:$0xf]
      %v238 = vld [vmem:[%s166 + $0xfc] sm:$0xf]
      %v239 = vld [vmem:[%s166 + $0x100] sm:$0xf]
      %v240 = vld [vmem:[%s166 + $0x104] sm:$0xf]
      %v241 = vld [vmem:[%s166 + $0x108] sm:$0xf]
      %v242 = vld [vmem:[%s166 + $0x10c] sm:$0xf]
      %v243 = vld [vmem:[%s166 + $0x110] sm:$0xf]
      %v244 = vld [vmem:[%s166 + $0x114] sm:$0xf]
      %v245 = vld [vmem:[%s166 + $0x118] sm:$0xf]
      %v246 = vld [vmem:[%s166 + $0x11c] sm:$0xf]
      %v247 = vld [vmem:[%s166 + $0x120] sm:$0xf]
      %v248 = vld [vmem:[%s166 + $0x124] sm:$0xf]
      %v249 = vld [vmem:[%s166 + $0x128] sm:$0xf]
      %v250 = vld [vmem:[%s166 + $0x12c] sm:$0xf]
      %v251 = vld [vmem:[%s166 + $0x130] sm:$0xf]
      %v252 = vld [vmem:[%s166 + $0x134] sm:$0xf]
      %v253 = vld [vmem:[%s166 + $0x138] sm:$0xf]
      %v254 = vld [vmem:[%s166 + $0x13c] sm:$0xf]
      %v255 = vld [vmem:[%s166 + $0x140] sm:$0xf]
      %v256 = vld [vmem:[%s166 + $0x144] sm:$0xf]
      %v257 = vld [vmem:[%s166 + $0x148] sm:$0xf]
      %v258 = vld [vmem:[%s166 + $0x14c] sm:$0xf]
      %v259 = vld [vmem:[%s166 + $0x150] sm:$0xf]
      %v260 = vld [vmem:[%s166 + $0x154] sm:$0xf]
      %v261 = vld [vmem:[%s166 + $0x158] sm:$0xf]
      %v262 = vld [vmem:[%s166 + $0x15c] sm:$0xf]
      %v263 = vld [vmem:[%s166 + $0x160] sm:$0xf]
      %v264 = vld [vmem:[%s166 + $0x164] sm:$0xf]
      %v265 = vld [vmem:[%s166 + $0x168] sm:$0xf]
      %v266 = vld [vmem:[%s166 + $0x16c] sm:$0xf]
      %v267 = vld [vmem:[%s166 + $0x170] sm:$0xf]
      %v268 = vld [vmem:[%s166 + $0x174] sm:$0xf]
      %v269 = vld [vmem:[%s166 + $0x178] sm:$0xf]
      %v270 = vld [vmem:[%s166 + $0x17c] sm:$0xf]
      %v271 = vld [vmem:[%s166 + $0x180] sm:$0xf]
      %v272 = vld [vmem:[%s166 + $0x184] sm:$0xf]
      %v273 = vld [vmem:[%s166 + $0x188] sm:$0xf]
      %v274 = vld [vmem:[%s166 + $0x18c] sm:$0xf]
      %v275 = vld [vmem:[%s166 + $0x190] sm:$0xf]
      %v276 = vld [vmem:[%s166 + $0x194] sm:$0xf]
      %v277 = vld [vmem:[%s166 + $0x198] sm:$0xf]
      %v278 = vld [vmem:[%s166 + $0x19c] sm:$0xf]
      %v279 = vld [vmem:[%s1] sm:$0xf]
      %v280 = vld [vmem:[%s1 + $0x4] sm:$0xf]
      %v281 = vld [vmem:[%s1 + $0x8] sm:$0xf]
      %v282 = vld [vmem:[%s1 + $0xc] sm:$0x1]
      %v387 = vunpack.c.l.b16 %v175
      %v388 = vunpack.c.l.b16 %v176
      %v389 = vunpack.c.l.b16 %v177
      %v390 = vunpack.c.l.b16 %v178
      %v391 = vunpack.c.l.b16 %v179
      %v392 = vunpack.c.l.b16 %v180
      %v393 = vunpack.c.l.b16 %v181
      %v394 = vunpack.c.l.b16 %v182
      %v395 = vunpack.c.l.b16 %v183
      %v396 = vunpack.c.l.b16 %v184
      %v397 = vunpack.c.l.b16 %v185
      %v398 = vunpack.c.l.b16 %v186
      %v399 = vunpack.c.l.b16 %v187
      %v400 = vunpack.c.l.b16 %v188
      %v401 = vunpack.c.l.b16 %v189
      %v402 = vunpack.c.l.b16 %v190
      %v403 = vunpack.c.l.b16 %v191
      %v404 = vunpack.c.l.b16 %v192
      %v405 = vunpack.c.l.b16 %v193
      %v406 = vunpack.c.l.b16 %v194
      %v407 = vunpack.c.l.b16 %v195
      %v408 = vunpack.c.l.b16 %v196
      %v409 = vunpack.c.l.b16 %v197
      %v410 = vunpack.c.l.b16 %v198
      %v411 = vunpack.c.l.b16 %v199
      %v412 = vunpack.c.l.b16 %v200
      %v413 = vunpack.c.l.b16 %v201
      %v414 = vunpack.c.l.b16 %v202
      %v415 = vunpack.c.l.b16 %v203
      %v416 = vunpack.c.l.b16 %v204
      %v417 = vunpack.c.l.b16 %v205
      %v418 = vunpack.c.l.b16 %v206
      %v419 = vunpack.c.l.b16 %v207
      %v420 = vunpack.c.l.b16 %v208
      %v421 = vunpack.c.l.b16 %v209
      %v422 = vunpack.c.l.b16 %v210
      %v423 = vunpack.c.l.b16 %v211
      %v424 = vunpack.c.l.b16 %v212
      %v425 = vunpack.c.l.b16 %v213
      %v426 = vunpack.c.l.b16 %v214
      %v427 = vunpack.c.l.b16 %v215
      %v428 = vunpack.c.l.b16 %v216
      %v429 = vunpack.c.l.b16 %v217
      %v430 = vunpack.c.l.b16 %v218
      %v431 = vunpack.c.l.b16 %v219
      %v432 = vunpack.c.l.b16 %v220
      %v433 = vunpack.c.l.b16 %v221
      %v434 = vunpack.c.l.b16 %v222
      %v435 = vunpack.c.l.b16 %v223
      %v436 = vunpack.c.l.b16 %v224
      %v437 = vunpack.c.l.b16 %v225
      %v438 = vunpack.c.l.b16 %v226
      %v439 = vunpack.c.l.b16 %v227
      %v440 = vunpack.c.l.b16 %v228
      %v441 = vunpack.c.l.b16 %v229
      %v442 = vunpack.c.l.b16 %v230
      %v443 = vunpack.c.l.b16 %v231
      %v444 = vunpack.c.l.b16 %v232
      %v445 = vunpack.c.l.b16 %v233
      %v446 = vunpack.c.l.b16 %v234
      %v447 = vunpack.c.l.b16 %v235
      %v448 = vunpack.c.l.b16 %v236
      %v449 = vunpack.c.l.b16 %v237
      %v450 = vunpack.c.l.b16 %v238
      %v451 = vunpack.c.l.b16 %v239
      %v452 = vunpack.c.l.b16 %v240
      %v453 = vunpack.c.l.b16 %v241
      %v454 = vunpack.c.l.b16 %v242
      %v455 = vunpack.c.l.b16 %v243
      %v456 = vunpack.c.l.b16 %v244
      %v457 = vunpack.c.l.b16 %v245
      %v458 = vunpack.c.l.b16 %v246
      %v459 = vunpack.c.l.b16 %v247
      %v460 = vunpack.c.l.b16 %v248
      %v461 = vunpack.c.l.b16 %v249
      %v462 = vunpack.c.l.b16 %v250
      %v463 = vunpack.c.l.b16 %v251
      %v464 = vunpack.c.l.b16 %v252
      %v465 = vunpack.c.l.b16 %v253
      %v466 = vunpack.c.l.b16 %v254
      %v467 = vunpack.c.l.b16 %v255
      %v468 = vunpack.c.l.b16 %v256
      %v469 = vunpack.c.l.b16 %v257
      %v470 = vunpack.c.l.b16 %v258
      %v471 = vunpack.c.l.b16 %v259
      %v472 = vunpack.c.l.b16 %v260
      %v473 = vunpack.c.l.b16 %v261
      %v474 = vunpack.c.l.b16 %v262
      %v475 = vunpack.c.l.b16 %v263
      %v476 = vunpack.c.l.b16 %v264
      %v477 = vunpack.c.l.b16 %v265
      %v478 = vunpack.c.l.b16 %v266
      %v479 = vunpack.c.l.b16 %v267
      %v480 = vunpack.c.l.b16 %v268
      %v481 = vunpack.c.l.b16 %v269
      %v482 = vunpack.c.l.b16 %v270
      %v483 = vunpack.c.l.b16 %v271
      %v484 = vunpack.c.l.b16 %v272
      %v485 = vunpack.c.l.b16 %v273
      %v486 = vunpack.c.l.b16 %v274
      %v487 = vunpack.c.l.b16 %v275
      %v488 = vunpack.c.l.b16 %v276
      %v489 = vunpack.c.l.b16 %v277
      %v490 = vunpack.c.l.b16 %v278
      %v491 = vpack.c.b16 %v388, %v387
      %v492 = vpack.c.b16 %v390, %v389
      %v493 = vpack.c.b16 %v392, %v391
      %v494 = vpack.c.b16 %v394, %v393
      %v495 = vpack.c.b16 %v396, %v395
      %v496 = vpack.c.b16 %v398, %v397
      %v497 = vpack.c.b16 %v400, %v399
      %v498 = vpack.c.b16 %v402, %v401
      %v499 = vpack.c.b16 %v404, %v403
      %v500 = vpack.c.b16 %v406, %v405
      %v501 = vpack.c.b16 %v408, %v407
      %v502 = vpack.c.b16 %v410, %v409
      %v503 = vpack.c.b16 %v412, %v411
      %v504 = vpack.c.b16 %v414, %v413
      %v505 = vpack.c.b16 %v416, %v415
      %v506 = vpack.c.b16 %v418, %v417
      %v507 = vpack.c.b16 %v420, %v419
      %v508 = vpack.c.b16 %v422, %v421
      %v509 = vpack.c.b16 %v424, %v423
      %v510 = vpack.c.b16 %v426, %v425
      %v511 = vpack.c.b16 %v428, %v427
      %v512 = vpack.c.b16 %v430, %v429
      %v513 = vpack.c.b16 %v432, %v431
      %v514 = vpack.c.b16 %v434, %v433
      %v515 = vpack.c.b16 %v436, %v435
      %v516 = vpack.c.b16 %v438, %v437
      %v517 = vpack.c.b16 %v440, %v439
      %v518 = vpack.c.b16 %v442, %v441
      %v519 = vpack.c.b16 %v444, %v443
      %v520 = vpack.c.b16 %v446, %v445
      %v521 = vpack.c.b16 %v448, %v447
      %v522 = vpack.c.b16 %v450, %v449
      %v523 = vpack.c.b16 %v452, %v451
      %v524 = vpack.c.b16 %v454, %v453
      %v525 = vpack.c.b16 %v456, %v455
      %v526 = vpack.c.b16 %v458, %v457
      %v527 = vpack.c.b16 %v460, %v459
      %v528 = vpack.c.b16 %v462, %v461
      %v529 = vpack.c.b16 %v464, %v463
      %v530 = vpack.c.b16 %v466, %v465
      %v531 = vpack.c.b16 %v468, %v467
      %v532 = vpack.c.b16 %v470, %v469
      %v533 = vpack.c.b16 %v472, %v471
      %v534 = vpack.c.b16 %v474, %v473
      %v535 = vpack.c.b16 %v476, %v475
      %v536 = vpack.c.b16 %v478, %v477
      %v537 = vpack.c.b16 %v480, %v479
      %v538 = vpack.c.b16 %v482, %v481
      %v539 = vpack.c.b16 %v484, %v483
      %v540 = vpack.c.b16 %v486, %v485
      %v541 = vpack.c.b16 %v488, %v487
      %v542 = vpack.c.b16 %v490, %v489
      %v547 = vunpack.c.l.b16 %v279
      %v548 = vunpack.c.l.b16 %v280
      %v549 = vunpack.c.l.b16 %v281
      %v550 = vunpack.c.l.b16 %v282
      %v551 = vpack.c.b16 %v548, %v547
      %v552 = vpack.c.b16 %v550, %v549
      %vm554 = vcmask 203776
      %v556 = vsel %vm554, %v491, 0
      %v559 = vsel %vm554, %v492, 0
      %v562 = vsel %vm554, %v493, 0
      %v565 = vsel %vm554, %v494, 0
      %v568 = vsel %vm554, %v495, 0
      %v571 = vsel %vm554, %v496, 0
      %v574 = vsel %vm554, %v497, 0
      %v577 = vsel %vm554, %v498, 0
      %v580 = vsel %vm554, %v499, 0
      %v583 = vsel %vm554, %v500, 0
      %v586 = vsel %vm554, %v501, 0
      %v589 = vsel %vm554, %v502, 0
      %v592 = vsel %vm554, %v503, 0
      %v595 = vsel %vm554, %v504, 0
      %v598 = vsel %vm554, %v505, 0
      %v601 = vsel %vm554, %v506, 0
      %v604 = vsel %vm554, %v507, 0
      %v607 = vsel %vm554, %v508, 0
      %v610 = vsel %vm554, %v509, 0
      %v613 = vsel %vm554, %v510, 0
      %v616 = vsel %vm554, %v511, 0
      %v619 = vsel %vm554, %v512, 0
      %v622 = vsel %vm554, %v513, 0
      %v625 = vsel %vm554, %v514, 0
      %v628 = vsel %vm554, %v515, 0
      %v631 = vsel %vm554, %v516, 0
      %v634 = vsel %vm554, %v517, 0
      %v637 = vsel %vm554, %v518, 0
      %v640 = vsel %vm554, %v519, 0
      %v643 = vsel %vm554, %v520, 0
      %v646 = vsel %vm554, %v521, 0
      %v649 = vsel %vm554, %v522, 0
      %v652 = vsel %vm554, %v523, 0
      %v655 = vsel %vm554, %v524, 0
      %v658 = vsel %vm554, %v525, 0
      %v661 = vsel %vm554, %v526, 0
      %v664 = vsel %vm554, %v527, 0
      %v667 = vsel %vm554, %v528, 0
      %v670 = vsel %vm554, %v529, 0
      %v673 = vsel %vm554, %v530, 0
      %v676 = vsel %vm554, %v531, 0
      %v679 = vsel %vm554, %v532, 0
      %v682 = vsel %vm554, %v533, 0
      %v685 = vsel %vm554, %v534, 0
      %v688 = vsel %vm554, %v535, 0
      %v691 = vsel %vm554, %v536, 0
      %v694 = vsel %vm554, %v537, 0
      %v697 = vsel %vm554, %v538, 0
      %v700 = vsel %vm554, %v539, 0
      %v703 = vsel %vm554, %v540, 0
      %v706 = vsel %vm554, %v541, 0
      %v709 = vsel %vm554, %v542, 0
      %vm711 = vcmask 1043456
      %vm712 = vcmask 1044480
      %v713 = vsel %vm711, 4294967295, 65535
      %v714 = vsel %vm712, %v713, 0
      %v716 = vand.u32 %v552, %v714
      %718 = vmatprep.subr.bf16.mxu0 0
      %719 = vmatpush1.bf16.msra.mxu0 %v551
      %720 = vmatprep.subr.bf16.mxu0 0
      %721 = vmatpush1.bf16.msra.mxu0 %v716
      %722 = vmatprep.subr.bf16.mxu0 0
      %723 = vmatpush1.bf16.msra.mxu0 0
      %724 = vmatprep.subr.bf16.mxu0 0
      %725 = vmatpush1.bf16.msra.mxu0 0
      %726 = vmatprep.subr.bf16.mxu0 0
      %727 = vmatpush1.bf16.msra.mxu0 0
      %728 = vmatprep.subr.bf16.mxu0 0
      %729 = vmatpush1.bf16.msra.mxu0 0
      %730 = vmatprep.subr.bf16.mxu0 0
      %731 = vmatpush1.bf16.msra.mxu0 0
      %732 = vmatprep.subr.bf16.mxu0 0
      %733 = vmatpush1.bf16.msra.mxu0 0
      %734 = vmatprep.subr.bf16.mxu0 0
      %735 = vmatpush1.bf16.msra.mxu0 0
      %736 = vmatprep.subr.bf16.mxu0 0
      %737 = vmatpush1.bf16.msra.mxu0 0
      %738 = vmatprep.subr.bf16.mxu0 0
      %739 = vmatpush1.bf16.msra.mxu0 0
      %740 = vmatprep.subr.bf16.mxu0 0
      %741 = vmatpush1.bf16.msra.mxu0 0
      %742 = vmatprep.subr.bf16.mxu0 0
      %743 = vmatpush1.bf16.msra.mxu0 0
      %744 = vmatprep.subr.bf16.mxu0 0
      %745 = vmatpush1.bf16.msra.mxu0 0
      %746 = vmatprep.subr.bf16.mxu0 0
      %747 = vmatpush1.bf16.msra.mxu0 0
      %748 = vmatprep.subr.bf16.mxu0 0
      %749 = vmatpush1.bf16.msra.mxu0 0
      %750 = vmatprep.mubr.bf16.mxu0 0
      %751 = vmatmul.mubr.bf16.gmra.mrb[0].mxu0 %v556
      %v752 = vpop.f32.mrb[0].mxu0
      %v753 = vadd.f32 0.0, %v752
      %v754 = vpop.f32.mrb[0].mxu0
      %v755 = vpop.f32.mrb[0].mxu0
      %v756 = vadd.f32 0.0, %v755
      %v757 = vpop.f32.mrb[0].mxu0
      %758 = vmatprep.mubr.bf16.mxu0 0
      %759 = vmatmul.mubr.bf16.gmra.mrb[0].mxu0 %v559
      %v760 = vpop.f32.mrb[0].mxu0
      %v761 = vadd.f32 0.0, %v760
      %v762 = vpop.f32.mrb[0].mxu0
      %v763 = vpop.f32.mrb[0].mxu0
      %v764 = vadd.f32 0.0, %v763
      %v765 = vpop.f32.mrb[0].mxu0
      %766 = vmatprep.mubr.bf16.mxu0 0
      %767 = vmatmul.mubr.bf16.gmra.mrb[0].mxu0 %v562
      %v768 = vpop.f32.mrb[0].mxu0
      %v769 = vadd.f32 0.0, %v768
      %v770 = vpop.f32.mrb[0].mxu0
      %v771 = vpop.f32.mrb[0].mxu0
      %v772 = vadd.f32 0.0, %v771
      %v773 = vpop.f32.mrb[0].mxu0
      %774 = vmatprep.mubr.bf16.mxu0 0
      %775 = vmatmul.mubr.bf16.gmra.mrb[0].mxu0 %v565
      %v776 = vpop.f32.mrb[0].mxu0
      %v777 = vadd.f32 0.0, %v776
      %v778 = vpop.f32.mrb[0].mxu0
      %v779 = vpop.f32.mrb[0].mxu0
      %v780 = vadd.f32 0.0, %v779
      %v781 = vpop.f32.mrb[0].mxu0
      %782 = vmatprep.mubr.bf16.mxu0 0
      %783 = vmatmul.mubr.bf16.gmra.mrb[0].mxu0 %v568
      %v784 = vpop.f32.mrb[0].mxu0
      %v785 = vadd.f32 0.0, %v784
      %v786 = vpop.f32.mrb[0].mxu0
      %v787 = vpop.f32.mrb[0].mxu0
      %v788 = vadd.f32 0.0, %v787
      %v789 = vpop.f32.mrb[0].mxu0
      %790 = vmatprep.mubr.bf16.mxu0 0
      %791 = vmatmul.mubr.bf16.gmra.mrb[0].mxu0 %v571
      %v792 = vpop.f32.mrb[0].mxu0
      %v793 = vadd.f32 0.0, %v792
      %v794 = vpop.f32.mrb[0].mxu0
      %v795 = vpop.f32.mrb[0].mxu0
      %v796 = vadd.f32 0.0, %v795
      %v797 = vpop.f32.mrb[0].mxu0
      %798 = vmatprep.mubr.bf16.mxu0 0
      %799 = vmatmul.mubr.bf16.gmra.mrb[0].mxu0 %v574
      %v800 = vpop.f32.mrb[0].mxu0
      %v801 = vadd.f32 0.0, %v800
      %v802 = vpop.f32.mrb[0].mxu0
      %v803 = vpop.f32.mrb[0].mxu0
      %v804 = vadd.f32 0.0, %v803
      %v805 = vpop.f32.mrb[0].mxu0
      %806 = vmatprep.mubr.bf16.mxu0 0
      %807 = vmatmul.mubr.bf16.gmra.mrb[0].mxu0 %v577
      %v808 = vpop.f32.mrb[0].mxu0
      %v809 = vadd.f32 0.0, %v808
      %v810 = vpop.f32.mrb[0].mxu0
      %v811 = vpop.f32.mrb[0].mxu0
      %v812 = vadd.f32 0.0, %v811
      %v813 = vpop.f32.mrb[0].mxu0
      %814 = vmatprep.mubr.bf16.mxu0 0
      %815 = vmatmul.mubr.bf16.gmra.mrb[0].mxu0 %v580
      %v816 = vpop.f32.mrb[0].mxu0
      %v817 = vadd.f32 0.0, %v816
      %v818 = vpop.f32.mrb[0].mxu0
      %v819 = vpop.f32.mrb[0].mxu0
      %v820 = vadd.f32 0.0, %v819
      %v821 = vpop.f32.mrb[0].mxu0
      %822 = vmatprep.mubr.bf16.mxu0 0
      %823 = vmatmul.mubr.bf16.gmra.mrb[0].mxu0 %v583
      %v824 = vpop.f32.mrb[0].mxu0
      %v825 = vadd.f32 0.0, %v824
      %v826 = vpop.f32.mrb[0].mxu0
      %v827 = vpop.f32.mrb[0].mxu0
      %v828 = vadd.f32 0.0, %v827
      %v829 = vpop.f32.mrb[0].mxu0
      %830 = vmatprep.mubr.bf16.mxu0 0
      %831 = vmatmul.mubr.bf16.gmra.mrb[0].mxu0 %v586
      %v832 = vpop.f32.mrb[0].mxu0
      %v833 = vadd.f32 0.0, %v832
      %v834 = vpop.f32.mrb[0].mxu0
      %v835 = vpop.f32.mrb[0].mxu0
      %v836 = vadd.f32 0.0, %v835
      %v837 = vpop.f32.mrb[0].mxu0
      %838 = vmatprep.mubr.bf16.mxu0 0
      %839 = vmatmul.mubr.bf16.gmra.mrb[0].mxu0 %v589
      %v840 = vpop.f32.mrb[0].mxu0
      %v841 = vadd.f32 0.0, %v840
      %v842 = vpop.f32.mrb[0].mxu0
      %v843 = vpop.f32.mrb[0].mxu0
      %v844 = vadd.f32 0.0, %v843
      %v845 = vpop.f32.mrb[0].mxu0
      %846 = vmatprep.mubr.bf16.mxu0 0
      %847 = vmatmul.mubr.bf16.gmra.mrb[0].mxu0 %v592
      %v848 = vpop.f32.mrb[0].mxu0
      %v849 = vadd.f32 0.0, %v848
      %v850 = vpop.f32.mrb[0].mxu0
      %v851 = vpop.f32.mrb[0].mxu0
      %v852 = vadd.f32 0.0, %v851
      %v853 = vpop.f32.mrb[0].mxu0
      %854 = vmatprep.mubr.bf16.mxu0 0
      %855 = vmatmul.mubr.bf16.gmra.mrb[0].mxu0 %v595
      %v856 = vpop.f32.mrb[0].mxu0
      %v857 = vadd.f32 0.0, %v856
      %v858 = vpop.f32.mrb[0].mxu0
      %v859 = vpop.f32.mrb[0].mxu0
      %v860 = vadd.f32 0.0, %v859
      %v861 = vpop.f32.mrb[0].mxu0
      %862 = vmatprep.mubr.bf16.mxu0 0
      %863 = vmatmul.mubr.bf16.gmra.mrb[0].mxu0 %v598
      %v864 = vpop.f32.mrb[0].mxu0
      %v865 = vadd.f32 0.0, %v864
      %v866 = vpop.f32.mrb[0].mxu0
      %v867 = vpop.f32.mrb[0].mxu0
      %v868 = vadd.f32 0.0, %v867
      %v869 = vpop.f32.mrb[0].mxu0
      %870 = vmatprep.mubr.bf16.mxu0 0
      %871 = vmatmul.mubr.bf16.gmra.mrb[0].mxu0 %v601
      %v872 = vpop.f32.mrb[0].mxu0
      %v873 = vadd.f32 0.0, %v872
      %v874 = vpop.f32.mrb[0].mxu0
      %v875 = vpop.f32.mrb[0].mxu0
      %v876 = vadd.f32 0.0, %v875
      %v877 = vpop.f32.mrb[0].mxu0
      %878 = vmatprep.mubr.bf16.mxu0 0
      %879 = vmatmul.mubr.bf16.gmra.mrb[0].mxu0 %v604
      %v880 = vpop.f32.mrb[0].mxu0
      %v881 = vadd.f32 0.0, %v880
      %v882 = vpop.f32.mrb[0].mxu0
      %v883 = vpop.f32.mrb[0].mxu0
      %v884 = vadd.f32 0.0, %v883
      %v885 = vpop.f32.mrb[0].mxu0
      %886 = vmatprep.mubr.bf16.mxu0 0
      %887 = vmatmul.mubr.bf16.gmra.mrb[0].mxu0 %v607
      %v888 = vpop.f32.mrb[0].mxu0
      %v889 = vadd.f32 0.0, %v888
      %v890 = vpop.f32.mrb[0].mxu0
      %v891 = vpop.f32.mrb[0].mxu0
      %v892 = vadd.f32 0.0, %v891
      %v893 = vpop.f32.mrb[0].mxu0
      %894 = vmatprep.mubr.bf16.mxu0 0
      %895 = vmatmul.mubr.bf16.gmra.mrb[0].mxu0 %v610
      %v896 = vpop.f32.mrb[0].mxu0
      %v897 = vadd.f32 0.0, %v896
      %v898 = vpop.f32.mrb[0].mxu0
      %v899 = vpop.f32.mrb[0].mxu0
      %v900 = vadd.f32 0.0, %v899
      %v901 = vpop.f32.mrb[0].mxu0
      %902 = vmatprep.mubr.bf16.mxu0 0
      %903 = vmatmul.mubr.bf16.gmra.mrb[0].mxu0 %v613
      %v904 = vpop.f32.mrb[0].mxu0
      %v905 = vadd.f32 0.0, %v904
      %v906 = vpop.f32.mrb[0].mxu0
      %v907 = vpop.f32.mrb[0].mxu0
      %v908 = vadd.f32 0.0, %v907
      %v909 = vpop.f32.mrb[0].mxu0
      %910 = vmatprep.mubr.bf16.mxu0 0
      %911 = vmatmul.mubr.bf16.gmra.mrb[0].mxu0 %v616
      %v912 = vpop.f32.mrb[0].mxu0
      %v913 = vadd.f32 0.0, %v912
      %v914 = vpop.f32.mrb[0].mxu0
      %v915 = vpop.f32.mrb[0].mxu0
      %v916 = vadd.f32 0.0, %v915
      %v917 = vpop.f32.mrb[0].mxu0
      %918 = vmatprep.mubr.bf16.mxu0 0
      %919 = vmatmul.mubr.bf16.gmra.mrb[0].mxu0 %v619
      %v920 = vpop.f32.mrb[0].mxu0
      %v921 = vadd.f32 0.0, %v920
      %v922 = vpop.f32.mrb[0].mxu0
      %v923 = vpop.f32.mrb[0].mxu0
      %v924 = vadd.f32 0.0, %v923
      %v925 = vpop.f32.mrb[0].mxu0
      %926 = vmatprep.mubr.bf16.mxu0 0
      %927 = vmatmul.mubr.bf16.gmra.mrb[0].mxu0 %v622
      %v928 = vpop.f32.mrb[0].mxu0
      %v929 = vadd.f32 0.0, %v928
      %v930 = vpop.f32.mrb[0].mxu0
      %v931 = vpop.f32.mrb[0].mxu0
      %v932 = vadd.f32 0.0, %v931
      %v933 = vpop.f32.mrb[0].mxu0
      %934 = vmatprep.mubr.bf16.mxu0 0
      %935 = vmatmul.mubr.bf16.gmra.mrb[0].mxu0 %v625
      %v936 = vpop.f32.mrb[0].mxu0
      %v937 = vadd.f32 0.0, %v936
      %v938 = vpop.f32.mrb[0].mxu0
      %v939 = vpop.f32.mrb[0].mxu0
      %v940 = vadd.f32 0.0, %v939
      %v941 = vpop.f32.mrb[0].mxu0
      %942 = vmatprep.mubr.bf16.mxu0 0
      %943 = vmatmul.mubr.bf16.gmra.mrb[0].mxu0 %v628
      %v944 = vpop.f32.mrb[0].mxu0
      %v945 = vadd.f32 0.0, %v944
      %v946 = vpop.f32.mrb[0].mxu0
      %v947 = vpop.f32.mrb[0].mxu0
      %v948 = vadd.f32 0.0, %v947
      %v949 = vpop.f32.mrb[0].mxu0
      %950 = vmatprep.mubr.bf16.mxu0 0
      %951 = vmatmul.mubr.bf16.gmra.mrb[0].mxu0 %v631
      %v952 = vpop.f32.mrb[0].mxu0
      %v953 = vadd.f32 0.0, %v952
      %v954 = vpop.f32.mrb[0].mxu0
      %v955 = vpop.f32.mrb[0].mxu0
      %v956 = vadd.f32 0.0, %v955
      %v957 = vpop.f32.mrb[0].mxu0
      %958 = vmatprep.mubr.bf16.mxu0 0
      %959 = vmatmul.mubr.bf16.gmra.mrb[0].mxu0 %v634
      %v960 = vpop.f32.mrb[0].mxu0
      %v961 = vadd.f32 0.0, %v960
      %v962 = vpop.f32.mrb[0].mxu0
      %v963 = vpop.f32.mrb[0].mxu0
      %v964 = vadd.f32 0.0, %v963
      %v965 = vpop.f32.mrb[0].mxu0
      %966 = vmatprep.mubr.bf16.mxu0 0
      %967 = vmatmul.mubr.bf16.gmra.mrb[0].mxu0 %v637
      %v968 = vpop.f32.mrb[0].mxu0
      %v969 = vadd.f32 0.0, %v968
      %v970 = vpop.f32.mrb[0].mxu0
      %v971 = vpop.f32.mrb[0].mxu0
      %v972 = vadd.f32 0.0, %v971
      %v973 = vpop.f32.mrb[0].mxu0
      %974 = vmatprep.mubr.bf16.mxu0 0
      %975 = vmatmul.mubr.bf16.gmra.mrb[0].mxu0 %v640
      %v976 = vpop.f32.mrb[0].mxu0
      %v977 = vadd.f32 0.0, %v976
      %v978 = vpop.f32.mrb[0].mxu0
      %v979 = vpop.f32.mrb[0].mxu0
      %v980 = vadd.f32 0.0, %v979
      %v981 = vpop.f32.mrb[0].mxu0
      %982 = vmatprep.mubr.bf16.mxu0 0
      %983 = vmatmul.mubr.bf16.gmra.mrb[0].mxu0 %v643
      %v984 = vpop.f32.mrb[0].mxu0
      %v985 = vadd.f32 0.0, %v984
      %v986 = vpop.f32.mrb[0].mxu0
      %v987 = vpop.f32.mrb[0].mxu0
      %v988 = vadd.f32 0.0, %v987
      %v989 = vpop.f32.mrb[0].mxu0
      %990 = vmatprep.mubr.bf16.mxu0 0
      %991 = vmatmul.mubr.bf16.gmra.mrb[0].mxu0 %v646
      %v992 = vpop.f32.mrb[0].mxu0
      %v993 = vadd.f32 0.0, %v992
      %v994 = vpop.f32.mrb[0].mxu0
      %v995 = vpop.f32.mrb[0].mxu0
      %v996 = vadd.f32 0.0, %v995
      %v997 = vpop.f32.mrb[0].mxu0
      %998 = vmatprep.mubr.bf16.mxu0 0
      %999 = vmatmul.mubr.bf16.gmra.mrb[0].mxu0 %v649
      %v1000 = vpop.f32.mrb[0].mxu0
      %v1001 = vadd.f32 0.0, %v1000
      %v1002 = vpop.f32.mrb[0].mxu0
      %v1003 = vpop.f32.mrb[0].mxu0
      %v1004 = vadd.f32 0.0, %v1003
      %v1005 = vpop.f32.mrb[0].mxu0
      %1006 = vmatprep.mubr.bf16.mxu0 0
      %1007 = vmatmul.mubr.bf16.gmra.mrb[0].mxu0 %v652
      %v1008 = vpop.f32.mrb[0].mxu0
      %v1009 = vadd.f32 0.0, %v1008
      %v1010 = vpop.f32.mrb[0].mxu0
      %v1011 = vpop.f32.mrb[0].mxu0
      %v1012 = vadd.f32 0.0, %v1011
      %v1013 = vpop.f32.mrb[0].mxu0
      %1014 = vmatprep.mubr.bf16.mxu0 0
      %1015 = vmatmul.mubr.bf16.gmra.mrb[0].mxu0 %v655
      %v1016 = vpop.f32.mrb[0].mxu0
      %v1017 = vadd.f32 0.0, %v1016
      %v1018 = vpop.f32.mrb[0].mxu0
      %v1019 = vpop.f32.mrb[0].mxu0
      %v1020 = vadd.f32 0.0, %v1019
      %v1021 = vpop.f32.mrb[0].mxu0
      %1022 = vmatprep.mubr.bf16.mxu0 0
      %1023 = vmatmul.mubr.bf16.gmra.mrb[0].mxu0 %v658
      %v1024 = vpop.f32.mrb[0].mxu0
      %v1025 = vadd.f32 0.0, %v1024
      %v1026 = vpop.f32.mrb[0].mxu0
      %v1027 = vpop.f32.mrb[0].mxu0
      %v1028 = vadd.f32 0.0, %v1027
      %v1029 = vpop.f32.mrb[0].mxu0
      %1030 = vmatprep.mubr.bf16.mxu0 0
      %1031 = vmatmul.mubr.bf16.gmra.mrb[0].mxu0 %v661
      %v1032 = vpop.f32.mrb[0].mxu0
      %v1033 = vadd.f32 0.0, %v1032
      %v1034 = vpop.f32.mrb[0].mxu0
      %v1035 = vpop.f32.mrb[0].mxu0
      %v1036 = vadd.f32 0.0, %v1035
      %v1037 = vpop.f32.mrb[0].mxu0
      %1038 = vmatprep.mubr.bf16.mxu0 0
      %1039 = vmatmul.mubr.bf16.gmra.mrb[0].mxu0 %v664
      %v1040 = vpop.f32.mrb[0].mxu0
      %v1041 = vadd.f32 0.0, %v1040
      %v1042 = vpop.f32.mrb[0].mxu0
      %v1043 = vpop.f32.mrb[0].mxu0
      %v1044 = vadd.f32 0.0, %v1043
      %v1045 = vpop.f32.mrb[0].mxu0
      %1046 = vmatprep.mubr.bf16.mxu0 0
      %1047 = vmatmul.mubr.bf16.gmra.mrb[0].mxu0 %v667
      %v1048 = vpop.f32.mrb[0].mxu0
      %v1049 = vadd.f32 0.0, %v1048
      %v1050 = vpop.f32.mrb[0].mxu0
      %v1051 = vpop.f32.mrb[0].mxu0
      %v1052 = vadd.f32 0.0, %v1051
      %v1053 = vpop.f32.mrb[0].mxu0
      %1054 = vmatprep.mubr.bf16.mxu0 0
      %1055 = vmatmul.mubr.bf16.gmra.mrb[0].mxu0 %v670
      %v1056 = vpop.f32.mrb[0].mxu0
      %v1057 = vadd.f32 0.0, %v1056
      %v1058 = vpop.f32.mrb[0].mxu0
      %v1059 = vpop.f32.mrb[0].mxu0
      %v1060 = vadd.f32 0.0, %v1059
      %v1061 = vpop.f32.mrb[0].mxu0
      %1062 = vmatprep.mubr.bf16.mxu0 0
      %1063 = vmatmul.mubr.bf16.gmra.mrb[0].mxu0 %v673
      %v1064 = vpop.f32.mrb[0].mxu0
      %v1065 = vadd.f32 0.0, %v1064
      %v1066 = vpop.f32.mrb[0].mxu0
      %v1067 = vpop.f32.mrb[0].mxu0
      %v1068 = vadd.f32 0.0, %v1067
      %v1069 = vpop.f32.mrb[0].mxu0
      %1070 = vmatprep.mubr.bf16.mxu0 0
      %1071 = vmatmul.mubr.bf16.gmra.mrb[0].mxu0 %v676
      %v1072 = vpop.f32.mrb[0].mxu0
      %v1073 = vadd.f32 0.0, %v1072
      %v1074 = vpop.f32.mrb[0].mxu0
      %v1075 = vpop.f32.mrb[0].mxu0
      %v1076 = vadd.f32 0.0, %v1075
      %v1077 = vpop.f32.mrb[0].mxu0
      %1078 = vmatprep.mubr.bf16.mxu0 0
      %1079 = vmatmul.mubr.bf16.gmra.mrb[0].mxu0 %v679
      %v1080 = vpop.f32.mrb[0].mxu0
      %v1081 = vadd.f32 0.0, %v1080
      %v1082 = vpop.f32.mrb[0].mxu0
      %v1083 = vpop.f32.mrb[0].mxu0
      %v1084 = vadd.f32 0.0, %v1083
      %v1085 = vpop.f32.mrb[0].mxu0
      %1086 = vmatprep.mubr.bf16.mxu0 0
      %1087 = vmatmul.mubr.bf16.gmra.mrb[0].mxu0 %v682
      %v1088 = vpop.f32.mrb[0].mxu0
      %v1089 = vadd.f32 0.0, %v1088
      %v1090 = vpop.f32.mrb[0].mxu0
      %v1091 = vpop.f32.mrb[0].mxu0
      %v1092 = vadd.f32 0.0, %v1091
      %v1093 = vpop.f32.mrb[0].mxu0
      %1094 = vmatprep.mubr.bf16.mxu0 0
      %1095 = vmatmul.mubr.bf16.gmra.mrb[0].mxu0 %v685
      %v1096 = vpop.f32.mrb[0].mxu0
      %v1097 = vadd.f32 0.0, %v1096
      %v1098 = vpop.f32.mrb[0].mxu0
      %v1099 = vpop.f32.mrb[0].mxu0
      %v1100 = vadd.f32 0.0, %v1099
      %v1101 = vpop.f32.mrb[0].mxu0
      %1102 = vmatprep.mubr.bf16.mxu0 0
      %1103 = vmatmul.mubr.bf16.gmra.mrb[0].mxu0 %v688
      %v1104 = vpop.f32.mrb[0].mxu0
      %v1105 = vadd.f32 0.0, %v1104
      %v1106 = vpop.f32.mrb[0].mxu0
      %v1107 = vpop.f32.mrb[0].mxu0
      %v1108 = vadd.f32 0.0, %v1107
      %v1109 = vpop.f32.mrb[0].mxu0
      %1110 = vmatprep.mubr.bf16.mxu0 0
      %1111 = vmatmul.mubr.bf16.gmra.mrb[0].mxu0 %v691
      %v1112 = vpop.f32.mrb[0].mxu0
      %v1113 = vadd.f32 0.0, %v1112
      %v1114 = vpop.f32.mrb[0].mxu0
      %v1115 = vpop.f32.mrb[0].mxu0
      %v1116 = vadd.f32 0.0, %v1115
      %v1117 = vpop.f32.mrb[0].mxu0
      %1118 = vmatprep.mubr.bf16.mxu0 0
      %1119 = vmatmul.mubr.bf16.gmra.mrb[0].mxu0 %v694
      %v1120 = vpop.f32.mrb[0].mxu0
      %v1121 = vadd.f32 0.0, %v1120
      %v1122 = vpop.f32.mrb[0].mxu0
      %v1123 = vpop.f32.mrb[0].mxu0
      %v1124 = vadd.f32 0.0, %v1123
      %v1125 = vpop.f32.mrb[0].mxu0
      %1126 = vmatprep.mubr.bf16.mxu0 0
      %1127 = vmatmul.mubr.bf16.gmra.mrb[0].mxu0 %v697
      %v1128 = vpop.f32.mrb[0].mxu0
      %v1129 = vadd.f32 0.0, %v1128
      %v1130 = vpop.f32.mrb[0].mxu0
      %v1131 = vpop.f32.mrb[0].mxu0
      %v1132 = vadd.f32 0.0, %v1131
      %v1133 = vpop.f32.mrb[0].mxu0
      %1134 = vmatprep.mubr.bf16.mxu0 0
      %1135 = vmatmul.mubr.bf16.gmra.mrb[0].mxu0 %v700
      %v1136 = vpop.f32.mrb[0].mxu0
      %v1137 = vadd.f32 0.0, %v1136
      %v1138 = vpop.f32.mrb[0].mxu0
      %v1139 = vpop.f32.mrb[0].mxu0
      %v1140 = vadd.f32 0.0, %v1139
      %v1141 = vpop.f32.mrb[0].mxu0
      %1142 = vmatprep.mubr.bf16.mxu0 0
      %1143 = vmatmul.mubr.bf16.gmra.mrb[0].mxu0 %v703
      %v1144 = vpop.f32.mrb[0].mxu0
      %v1145 = vadd.f32 0.0, %v1144
      %v1146 = vpop.f32.mrb[0].mxu0
      %v1147 = vpop.f32.mrb[0].mxu0
      %v1148 = vadd.f32 0.0, %v1147
      %v1149 = vpop.f32.mrb[0].mxu0
      %1150 = vmatprep.mubr.bf16.mxu0 0
      %1151 = vmatmul.mubr.bf16.gmra.mrb[0].mxu0 %v706
      %v1152 = vpop.f32.mrb[0].mxu0
      %v1153 = vadd.f32 0.0, %v1152
      %v1154 = vpop.f32.mrb[0].mxu0
      %v1155 = vpop.f32.mrb[0].mxu0
      %v1156 = vadd.f32 0.0, %v1155
      %v1157 = vpop.f32.mrb[0].mxu0
      %1158 = vmatprep.mubr.bf16.mxu0 0
      %1159 = vmatmul.mubr.bf16.gmra.mrb[0].mxu0 %v709
      %v1160 = vpop.f32.mrb[0].mxu0
      %v1161 = vadd.f32 0.0, %v1160
      %v1162 = vpop.f32.mrb[0].mxu0
      %v1163 = vpop.f32.mrb[0].mxu0
      %v1164 = vadd.f32 0.0, %v1163
      %v1165 = vpop.f32.mrb[0].mxu0
      %1166 = vdwg.mxu0
      %v1167 = vmax.f32 %v753, %v857
      %v1168 = vmax.f32 %v756, %v860
      %v1169 = vmax.f32 %v761, %v865
      %v1170 = vmax.f32 %v764, %v868
      %v1171 = vmax.f32 %v769, %v873
      %v1172 = vmax.f32 %v772, %v876
      %v1173 = vmax.f32 %v777, %v881
      %v1174 = vmax.f32 %v780, %v884
      %v1175 = vmax.f32 %v785, %v889
      %v1176 = vmax.f32 %v788, %v892
      %v1177 = vmax.f32 %v793, %v897
      %v1178 = vmax.f32 %v796, %v900
      %v1179 = vmax.f32 %v801, %v905
      %v1180 = vmax.f32 %v804, %v908
      %v1181 = vmax.f32 %v809, %v913
      %v1182 = vmax.f32 %v812, %v916
      %v1183 = vmax.f32 %v817, %v921
      %v1184 = vmax.f32 %v820, %v924
      %v1185 = vmax.f32 %v825, %v929
      %v1186 = vmax.f32 %v828, %v932
      %v1187 = vmax.f32 %v833, %v937
      %v1188 = vmax.f32 %v836, %v940
      %v1189 = vmax.f32 %v841, %v945
      %v1190 = vmax.f32 %v844, %v948
      %v1191 = vmax.f32 %v849, %v953
      %v1192 = vmax.f32 %v852, %v956
      %v1193 = vmax.f32 %v961, %v1065
      %v1194 = vmax.f32 %v964, %v1068
      %v1195 = vmax.f32 %v969, %v1073
      %v1196 = vmax.f32 %v972, %v1076
      %v1197 = vmax.f32 %v977, %v1081
      %v1198 = vmax.f32 %v980, %v1084
      %v1199 = vmax.f32 %v985, %v1089
      %v1200 = vmax.f32 %v988, %v1092
      %v1201 = vmax.f32 %v993, %v1097
      %v1202 = vmax.f32 %v996, %v1100
      %v1203 = vmax.f32 %v1001, %v1105
      %v1204 = vmax.f32 %v1004, %v1108
      %v1205 = vmax.f32 %v1009, %v1113
      %v1206 = vmax.f32 %v1012, %v1116
      %v1207 = vmax.f32 %v1017, %v1121
      %v1208 = vmax.f32 %v1020, %v1124
      %v1209 = vmax.f32 %v1025, %v1129
      %v1210 = vmax.f32 %v1028, %v1132
      %v1211 = vmax.f32 %v1033, %v1137
      %v1212 = vmax.f32 %v1036, %v1140
      %v1213 = vmax.f32 %v1041, %v1145
      %v1214 = vmax.f32 %v1044, %v1148
      %v1215 = vmax.f32 %v1049, %v1153
      %v1216 = vmax.f32 %v1052, %v1156
      %v1217 = vmax.f32 %v1057, %v1161
      %v1218 = vmax.f32 %v1060, %v1164
      %v1219 = vmax.f32 %v1167, %v1193
      %v1220 = vmax.f32 %v1168, %v1194
      %v1221 = vmax.f32 %v1169, %v1195
      %v1222 = vmax.f32 %v1170, %v1196
      %v1223 = vmax.f32 %v1171, %v1197
      %v1224 = vmax.f32 %v1172, %v1198
      %v1225 = vmax.f32 %v1173, %v1199
      %v1226 = vmax.f32 %v1174, %v1200
      %v1227 = vmax.f32 %v1175, %v1201
      %v1228 = vmax.f32 %v1176, %v1202
      %v1229 = vmax.f32 %v1177, %v1203
      %v1230 = vmax.f32 %v1178, %v1204
      %v1231 = vmax.f32 %v1179, %v1205
      %v1232 = vmax.f32 %v1180, %v1206
      %v1233 = vmax.f32 %v1181, %v1207
      %v1234 = vmax.f32 %v1182, %v1208
      %v1235 = vmax.f32 %v1183, %v1209
      %v1236 = vmax.f32 %v1184, %v1210
      %v1237 = vmax.f32 %v1185, %v1211
      %v1238 = vmax.f32 %v1186, %v1212
      %v1239 = vmax.f32 %v1187, %v1213
      %v1240 = vmax.f32 %v1188, %v1214
      %v1241 = vmax.f32 %v1189, %v1215
      %v1242 = vmax.f32 %v1190, %v1216
      %v1243 = vmax.f32 %v1191, %v1217
      %v1244 = vmax.f32 %v1192, %v1218
      %v1245 = vld [vmem:[%s2] sm:$0x1]
      %v1247 = vlaneseq
      %v1248 = vshrl.u32 %v1247, 7
      %v1249 = vsub.s32 0, %v1248
      %v1250 = vrot.slane %v1245, %v1249
      %v1252 = vadd.f32 %v1219, %v1250
      %v1253 = vadd.f32 %v1220, %v1250
      %v1254 = vadd.f32 %v1221, %v1250
      %v1255 = vadd.f32 %v1222, %v1250
      %v1256 = vadd.f32 %v1223, %v1250
      %v1257 = vadd.f32 %v1224, %v1250
      %v1258 = vadd.f32 %v1225, %v1250
      %v1259 = vadd.f32 %v1226, %v1250
      %v1260 = vadd.f32 %v1227, %v1250
      %v1261 = vadd.f32 %v1228, %v1250
      %v1262 = vadd.f32 %v1229, %v1250
      %v1263 = vadd.f32 %v1230, %v1250
      %v1264 = vadd.f32 %v1231, %v1250
      %v1265 = vadd.f32 %v1232, %v1250
      %v1266 = vadd.f32 %v1233, %v1250
      %v1267 = vadd.f32 %v1234, %v1250
      %v1268 = vadd.f32 %v1235, %v1250
      %v1269 = vadd.f32 %v1236, %v1250
      %v1270 = vadd.f32 %v1237, %v1250
      %v1271 = vadd.f32 %v1238, %v1250
      %v1272 = vadd.f32 %v1239, %v1250
      %v1273 = vadd.f32 %v1240, %v1250
      %v1274 = vadd.f32 %v1241, %v1250
      %v1275 = vadd.f32 %v1242, %v1250
      %v1276 = vadd.f32 %v1243, %v1250
      %v1277 = vadd.f32 %v1244, %v1250
      %v1278 = vmax.f32 %v1252, 0.0
      %v1279 = vmax.f32 %v1253, 0.0
      %v1280 = vmax.f32 %v1254, 0.0
      %v1281 = vmax.f32 %v1255, 0.0
      %v1282 = vmax.f32 %v1256, 0.0
      %v1283 = vmax.f32 %v1257, 0.0
      %v1284 = vmax.f32 %v1258, 0.0
      %v1285 = vmax.f32 %v1259, 0.0
      %v1286 = vmax.f32 %v1260, 0.0
      %v1287 = vmax.f32 %v1261, 0.0
      %v1288 = vmax.f32 %v1262, 0.0
      %v1289 = vmax.f32 %v1263, 0.0
      %v1290 = vmax.f32 %v1264, 0.0
      %v1291 = vmax.f32 %v1265, 0.0
      %v1292 = vmax.f32 %v1266, 0.0
      %v1293 = vmax.f32 %v1267, 0.0
      %v1294 = vmax.f32 %v1268, 0.0
      %v1295 = vmax.f32 %v1269, 0.0
      %v1296 = vmax.f32 %v1270, 0.0
      %v1297 = vmax.f32 %v1271, 0.0
      %v1298 = vmax.f32 %v1272, 0.0
      %v1299 = vmax.f32 %v1273, 0.0
      %v1300 = vmax.f32 %v1274, 0.0
      %v1301 = vmax.f32 %v1275, 0.0
      %v1302 = vmax.f32 %v1276, 0.0
      %v1303 = vmax.f32 %v1277, 0.0
      %v1304 = vpack.c.bf16 %v1279, %v1278
      %v1305 = vpack.c.bf16 %v1281, %v1280
      %v1306 = vpack.c.bf16 %v1283, %v1282
      %v1307 = vpack.c.bf16 %v1285, %v1284
      %v1308 = vpack.c.bf16 %v1287, %v1286
      %v1309 = vpack.c.bf16 %v1289, %v1288
      %v1310 = vpack.c.bf16 %v1291, %v1290
      %v1311 = vpack.c.bf16 %v1293, %v1292
      %v1312 = vpack.c.bf16 %v1295, %v1294
      %v1313 = vpack.c.bf16 %v1297, %v1296
      %v1314 = vpack.c.bf16 %v1299, %v1298
      %v1315 = vpack.c.bf16 %v1301, %v1300
      %v1316 = vpack.c.bf16 %v1303, %v1302
      %v1330 = vunpack.c.l.b16 %v1304
      %v1331 = vunpack.c.h.b16 %v1304
      %v1332 = vunpack.c.l.b16 %v1305
      %v1333 = vunpack.c.h.b16 %v1305
      %v1334 = vunpack.c.l.b16 %v1306
      %v1335 = vunpack.c.h.b16 %v1306
      %v1336 = vunpack.c.l.b16 %v1307
      %v1337 = vunpack.c.h.b16 %v1307
      %v1338 = vunpack.c.l.b16 %v1308
      %v1339 = vunpack.c.h.b16 %v1308
      %v1340 = vunpack.c.l.b16 %v1309
      %v1341 = vunpack.c.h.b16 %v1309
      %v1342 = vunpack.c.l.b16 %v1310
      %v1343 = vunpack.c.h.b16 %v1310
      %v1344 = vunpack.c.l.b16 %v1311
      %v1345 = vunpack.c.h.b16 %v1311
      %v1346 = vunpack.c.l.b16 %v1312
      %v1347 = vunpack.c.h.b16 %v1312
      %v1348 = vunpack.c.l.b16 %v1313
      %v1349 = vunpack.c.h.b16 %v1313
      %v1350 = vunpack.c.l.b16 %v1314
      %v1351 = vunpack.c.h.b16 %v1314
      %v1352 = vunpack.c.l.b16 %v1315
      %v1353 = vunpack.c.h.b16 %v1315
      %v1354 = vunpack.c.l.b16 %v1316
      %v1355 = vunpack.c.h.b16 %v1316
      %v1356 = vpack.c.b16 %v1330, %v1330
      %v1357 = vpack.c.b16 %v1331, %v1331
      %v1358 = vpack.c.b16 %v1332, %v1332
      %v1359 = vpack.c.b16 %v1333, %v1333
      %v1360 = vpack.c.b16 %v1334, %v1334
      %v1361 = vpack.c.b16 %v1335, %v1335
      %v1362 = vpack.c.b16 %v1336, %v1336
      %v1363 = vpack.c.b16 %v1337, %v1337
      %v1364 = vpack.c.b16 %v1338, %v1338
      %v1365 = vpack.c.b16 %v1339, %v1339
      %v1366 = vpack.c.b16 %v1340, %v1340
      %v1367 = vpack.c.b16 %v1341, %v1341
      %v1368 = vpack.c.b16 %v1342, %v1342
      %v1369 = vpack.c.b16 %v1343, %v1343
      %v1370 = vpack.c.b16 %v1344, %v1344
      %v1371 = vpack.c.b16 %v1345, %v1345
      %v1372 = vpack.c.b16 %v1346, %v1346
      %v1373 = vpack.c.b16 %v1347, %v1347
      %v1374 = vpack.c.b16 %v1348, %v1348
      %v1375 = vpack.c.b16 %v1349, %v1349
      %v1376 = vpack.c.b16 %v1350, %v1350
      %v1377 = vpack.c.b16 %v1351, %v1351
      %v1378 = vpack.c.b16 %v1352, %v1352
      %v1379 = vpack.c.b16 %v1353, %v1353
      %v1380 = vpack.c.b16 %v1354, %v1354
      %v1381 = vpack.c.b16 %v1355, %v1355
      %1408 = vst [vmem:[%s172] sm:$0xf] %v1356
      %1409 = vst [vmem:[%s172 + $0x4] sm:$0xf] %v1357
      %1410 = vst [vmem:[%s172 + $0x8] sm:$0xf] %v1358
      %1411 = vst [vmem:[%s172 + $0xc] sm:$0xf] %v1359
      %1412 = vst [vmem:[%s172 + $0x10] sm:$0xf] %v1360
      %1413 = vst [vmem:[%s172 + $0x14] sm:$0xf] %v1361
      %1414 = vst [vmem:[%s172 + $0x18] sm:$0xf] %v1362
      %1415 = vst [vmem:[%s172 + $0x1c] sm:$0xf] %v1363
      %1416 = vst [vmem:[%s172 + $0x20] sm:$0xf] %v1364
      %1417 = vst [vmem:[%s172 + $0x24] sm:$0xf] %v1365
      %1418 = vst [vmem:[%s172 + $0x28] sm:$0xf] %v1366
      %1419 = vst [vmem:[%s172 + $0x2c] sm:$0xf] %v1367
      %1420 = vst [vmem:[%s172 + $0x30] sm:$0xf] %v1368
      %1421 = vst [vmem:[%s172 + $0x34] sm:$0xf] %v1369
      %1422 = vst [vmem:[%s172 + $0x38] sm:$0xf] %v1370
      %1423 = vst [vmem:[%s172 + $0x3c] sm:$0xf] %v1371
      %1424 = vst [vmem:[%s172 + $0x40] sm:$0xf] %v1372
      %1425 = vst [vmem:[%s172 + $0x44] sm:$0xf] %v1373
      %1426 = vst [vmem:[%s172 + $0x48] sm:$0xf] %v1374
      %1427 = vst [vmem:[%s172 + $0x4c] sm:$0xf] %v1375
      %1428 = vst [vmem:[%s172 + $0x50] sm:$0xf] %v1376
      %1429 = vst [vmem:[%s172 + $0x54] sm:$0xf] %v1377
      %1430 = vst [vmem:[%s172 + $0x58] sm:$0xf] %v1378
      %1431 = vst [vmem:[%s172 + $0x5c] sm:$0xf] %v1379
      %1432 = vst [vmem:[%s172 + $0x60] sm:$0xf] %v1380
      %1433 = vst [vmem:[%s172 + $0x64] sm:$0xf] %v1381
      %s1434 = smul.u32 26, %s14
      %p1435 = scmp.lt.s32.totalorder %s1434, 51
      %s1436 = scalar_select %p1435, %s1434, 51
      %s1437 = smul.addr %s1436, 4
      %s1438 = scalar_lea.vmem %s3, %s1437
      // Predicated region
      $region33: #{cnn_forward.2} parent=31 // pred_check
        %p1439 = pneg %p100
      $region34: #{cnn_forward.2} parent=31 // pred_check_branch
        %1441 = sbr.rel (%p1439) target = $region36
      $region35: #{cnn_forward.2} parent=31 // pred_region
        %s1442 = smul.u32 26, %s14
      $region36: #{cnn_forward.2} parent=31 // pred_fallthru
        _
    $region32: #{cnn_forward.2} parent=5 // pred_fallthru
      _
    %p1443 = scmp.le.s32.totalorder 2, %s9
    // Predicated region
    $region37: #{cnn_forward.2} parent=5 // pred_check
      %p1444 = pneg %p1443
    $region38: #{cnn_forward.2} parent=5 // pred_check_branch
      %1446 = sbr.rel (%p1444) target = $region40
    $region39: #{cnn_forward.2} parent=5 // pred_region
      %s1447 = ssub.s32 %s9, 2
      // Predicated region
      $region41: #{cnn_forward.2} parent=39 // pred_check
        %p1448 = pneg %p106
      $region42: #{cnn_forward.2} parent=39 // pred_check_branch
        %1450 = sbr.rel (%p1448) target = $region44
      $region43: #{cnn_forward.2} parent=39 // pred_region
        %s1451 = smul.u32 26, %s15
        %p1452 = scmp.lt.s32.totalorder %s1451, 51
        %s1453 = scalar_select %p1452, %s1451, 51
        %s1454 = smul.addr %s1453, 4
        %s1455 = scalar_lea.vmem %s3, %s1454
      $region44: #{cnn_forward.2} parent=39 // pred_fallthru
        _
    $region40: #{cnn_forward.2} parent=5 // pred_fallthru
      _
  $region6: #{cnn_forward.2} parent=0 // loop_footer
    %s13 = sadd.s32 1, %s9
  $region7: #{cnn_forward.2} parent=0 // loop_footer_branch
    %8 = sbr.rel target = $region3
  $region8: #{cnn_forward.2} parent=0 // loop_exit
    _

// kernel: cnn_forward.3
$region0: #{cnn_forward.3}
  #allocation0 [shape = 'u32[]', space=smem, size = 0x4, offset = 0x4, fixed_abs, tag = 'smem constant byte address 0x4 - core index']
  #allocation1 [shape = 'u32[144,128]{1,0:T(1,128)}', space=vmem, size = 0x12000, scoped, tag = 'internal scratch']
  %s0 = inlined_call_operand.vmem [shape: bf16[512,400], index: 0, kind: input, shape index: {}]
  %s1 = inlined_call_operand.vmem [shape: bf16[400,128], index: 1, kind: input, shape index: {}]
  %s2 = inlined_call_operand.vmem [shape: f32[1,128], index: 2, kind: input, shape index: {}]
  %s3 = inlined_call_operand.vmem [shape: f32[128,128], index: 3, kind: output, shape index: {}]
  %s4 = sld [smem:[#allocation0]]
  $region45: #{cnn_forward.3} parent=0
    _
  %s6 = ssub.s32 1, %s4
  %s7 = scalar_select 0, %s6, %s4
  loop: start=0, step=1, limit=4
  $region2: #{cnn_forward.3} parent=0 // loop_pre_header
    _
  $region3: #{cnn_forward.3} parent=0 // loop_header
    %s9 = sphi 0, %s13
    %p10 = scmp.ge.s32.totalorder %s9, 4
    %s19 = sphi 0, %s21
    %s22 = sphi 0, %s19
    %s23 = sphi 0, %s22
    %s39 = sphi 0, %s23
    %s43 = sphi 0, %s43
    %s45 = sphi 0, %s43
    %s46 = sphi 0, %s45
    %s60 = sphi 0, %s46
    %s64 = sphi 0, %s64
    %s66 = sphi 0, %s64
    %s67 = sphi 0, %s66
    %s81 = sphi 0, %s67
    %s87 = sphi 0, %s89
    %s90 = sphi 0, %s87
    %s91 = sphi 0, %s90
    %s107 = sphi 0, %s91
  $region4: #{cnn_forward.3} parent=0 // loop_header_branch
    %12 = sbr.rel (%p10) target = $region8
  $region5: #{cnn_forward.3} parent=0 // loop_body
    %s14 = ssub.s32 %s9, 1
    %s15 = ssub.s32 %s9, 2
    %s16 = sadd.s32 %s9, 1
    %s17 = ssub.s32 %s9, %s16
    %p18 = scmp.eq.s32.totalorder %s17, 0
    %s20 = sadd.s32 %s19, 1
    %s21 = scalar_select %p18, %s19, %s20
    %p24 = pneg %p18
    %p25 = scmp.eq.s32.totalorder %s9, 1
    %p26 = por %p24, %p25
    %p27 = scmp.ne.s32.totalorder %s19, %s22
    %p28 = scmp.eq.s32.totalorder %s9, 0
    %p29 = por %p27, %p28
    %p30 = scmp.ne.s32.totalorder %s19, %s22
    %p31 = scmp.eq.s32.totalorder %s14, 1
    %p32 = por %p30, %p31
    %p33 = scmp.ne.s32.totalorder %s22, %s23
    %p34 = scmp.eq.s32.totalorder %s14, 0
    %p35 = por %p33, %p34
    %p36 = scmp.ne.s32.totalorder %s22, %s23
    %p37 = scmp.eq.s32.totalorder %s15, 1
    %p38 = por %p36, %p37
    %p40 = scmp.ne.s32.totalorder %s23, %s39
    %p41 = scmp.eq.s32.totalorder %s15, 0
    %p42 = por %p40, %p41
    %s44 = sadd.s32 %s43, 1
    %p47 = scmp.eq.s32.totalorder %s9, 1
    %p48 = scmp.ne.s32.totalorder %s43, %s45
    %p49 = scmp.eq.s32.totalorder %s9, 0
    %p50 = por %p48, %p49
    %p51 = scmp.ne.s32.totalorder %s43, %s45
    %p52 = scmp.eq.s32.totalorder %s14, 1
    %p53 = por %p51, %p52
    %p54 = scmp.ne.s32.totalorder %s45, %s46
    %p55 = scmp.eq.s32.totalorder %s14, 0
    %p56 = por %p54, %p55
    %p57 = scmp.ne.s32.totalorder %s45, %s46
    %p58 = scmp.eq.s32.totalorder %s15, 1
    %p59 = por %p57, %p58
    %p61 = scmp.ne.s32.totalorder %s46, %s60
    %p62 = scmp.eq.s32.totalorder %s15, 0
    %p63 = por %p61, %p62
    %s65 = sadd.s32 %s64, 1
    %p68 = scmp.eq.s32.totalorder %s9, 1
    %p69 = scmp.ne.s32.totalorder %s64, %s66
    %p70 = scmp.eq.s32.totalorder %s9, 0
    %p71 = por %p69, %p70
    %p72 = scmp.ne.s32.totalorder %s64, %s66
    %p73 = scmp.eq.s32.totalorder %s14, 1
    %p74 = por %p72, %p73
    %p75 = scmp.ne.s32.totalorder %s66, %s67
    %p76 = scmp.eq.s32.totalorder %s14, 0
    %p77 = por %p75, %p76
    %p78 = scmp.ne.s32.totalorder %s66, %s67
    %p79 = scmp.eq.s32.totalorder %s15, 1
    %p80 = por %p78, %p79
    %p82 = scmp.ne.s32.totalorder %s67, %s81
    %p83 = scmp.eq.s32.totalorder %s15, 0
    %p84 = por %p82, %p83
    %s85 = ssub.s32 %s9, %s16
    %p86 = scmp.eq.s32.totalorder %s85, 0
    %s88 = sadd.s32 %s87, 1
    %s89 = scalar_select %p86, %s87, %s88
    %p92 = pneg %p86
    %p93 = scmp.eq.s32.totalorder %s9, 1
    %p94 = por %p92, %p93
    %p95 = scmp.ne.s32.totalorder %s87, %s90
    %p96 = scmp.eq.s32.totalorder %s9, 0
    %p97 = por %p95, %p96
    %p98 = scmp.ne.s32.totalorder %s87, %s90
    %p99 = scmp.eq.s32.totalorder %s14, 1
    %p100 = por %p98, %p99
    %p101 = scmp.ne.s32.totalorder %s90, %s91
    %p102 = scmp.eq.s32.totalorder %s14, 0
    %p103 = por %p101, %p102
    %p104 = scmp.ne.s32.totalorder %s90, %s91
    %p105 = scmp.eq.s32.totalorder %s15, 1
    %p106 = por %p104, %p105
    %p108 = scmp.ne.s32.totalorder %s91, %s107
    %p109 = scmp.eq.s32.totalorder %s15, 0
    %p110 = por %p108, %p109
    %p111 = scmp.le.s32.totalorder 1, %s9
    %p112 = scmp.lt.s32.totalorder %s9, 3
    %p113 = pnand %p111, %p112
    %p114 = pneg %p113
    // Predicated region
    $region9: #{cnn_forward.3} parent=5 // pred_check
      _
    $region10: #{cnn_forward.3} parent=5 // pred_check_branch
      %116 = sbr.rel (%p113) target = $region12
    $region11: #{cnn_forward.3} parent=5 // pred_region
      %s117 = ssub.s32 %s9, 1
      // Predicated region
      $region13: #{cnn_forward.3} parent=11 // pred_check
        %p118 = pneg %p56
      $region14: #{cnn_forward.3} parent=11 // pred_check_branch
        %120 = sbr.rel (%p118) target = $region16
      $region15: #{cnn_forward.3} parent=11 // pred_region
        _
      $region16: #{cnn_forward.3} parent=11 // pred_fallthru
        _
      // Predicated region
      $region17: #{cnn_forward.3} parent=11 // pred_check
        %p121 = pneg %p77
      $region18: #{cnn_forward.3} parent=11 // pred_check_branch
        %123 = sbr.rel (%p121) target = $region20
      $region19: #{cnn_forward.3} parent=11 // pred_region
        _
      $region20: #{cnn_forward.3} parent=11 // pred_fallthru
        _
    $region12: #{cnn_forward.3} parent=5 // pred_fallthru
      _
    %p124 = scmp.lt.s32.totalorder %s9, 2
    // Predicated region
    $region21: #{cnn_forward.3} parent=5 // pred_check
      %p125 = pneg %p124
    $region22: #{cnn_forward.3} parent=5 // pred_check_branch
      %127 = sbr.rel (%p125) target = $region24
    $region23: #{cnn_forward.3} parent=5 // pred_region
      // Predicated region
      $region25: #{cnn_forward.3} parent=23 // pred_check
        %p128 = pneg %p29
      $region26: #{cnn_forward.3} parent=23 // pred_check_branch
        %130 = sbr.rel (%p128) target = $region28
      $region27: #{cnn_forward.3} parent=23 // pred_region
        %s131 = smul.u32 32, %s9
        %p132 = scmp.lt.s32.totalorder %s131, 63
        %s133 = scalar_select %p132, %s131, 63
        %s134 = smul.addr %s133, 4
        %s135 = smul.addr %s134, 4
        %s136 = scalar_lea.vmem %s0, %s135
        %s137 = smul.u32 32, %s9
      $region28: #{cnn_forward.3} parent=23 // pred_fallthru
        _
    $region24: #{cnn_forward.3} parent=5 // pred_fallthru
      _
    %p138 = scmp.le.s32.totalorder 1, %s9
    %p139 = scmp.lt.s32.totalorder %s9, 3
    %p140 = pnand %p138, %p139
    %p141 = pneg %p140
    // Predicated region
    $region29: #{cnn_forward.3} parent=5 // pred_check
      _
    $region30: #{cnn_forward.3} parent=5 // pred_check_branch
      %143 = sbr.rel (%p140) target = $region32
    $region31: #{cnn_forward.3} parent=5 // pred_region
      %s144 = ssub.s32 %s9, 1
      %s145 = smul.u32 32, %s14
      %p146 = scmp.lt.s32.totalorder %s145, 63
      %s147 = scalar_select %p146, %s145, 63
      %s148 = smul.addr %s147, 4
      %s149 = smul.addr %s148, 4
      %s150 = scalar_lea.vmem %s0, %s149
      %p151 = pneg %p35
      %p152 = pneg %p32
      %p153 = pneg %p56
      %p154 = pneg %p53
      %p155 = pneg %p77
      %p156 = pneg %p74
      %p157 = pneg %p103
      %p158 = pneg %p100
      %s159 = smul.u32 8, %s14
      %p160 = scmp.lt.s32.totalorder %s159, 15
      %s161 = scalar_select %p160, %s159, 15
      %s162 = smul.addr %s161, 8
      %s163 = scalar_lea.vmem %s3, %s162
      %s164 = smul.u32 32, %s14
      %p165 = scmp.lt.s32.totalorder %s164, 63
      %s166 = scalar_select %p165, %s164, 63
      %s167 = smul.addr %s166, 4
      %s168 = smul.addr %s167, 4
      %s169 = scalar_lea.vmem %s0, %s168
      %s170 = smul.u32 32, %s14
      %s171 = smul.u32 8, %s14
      %p172 = scmp.lt.s32.totalorder %s171, 15
      %s173 = scalar_select %p172, %s171, 15
      %s174 = smul.addr %s173, 8
      %s175 = scalar_lea.vmem %s3, %s174
      %s176 = smul.u32 8, %s14
      %v178 = vld [vmem:[%s169] sm:$0xff]
      %v179 = vld [vmem:[%s169 + $0x8] sm:$0xff]
      %v180 = vld [vmem:[%s169 + $0x10] sm:$0xff]
      %v181 = vld [vmem:[%s169 + $0x18] sm:$0xff]
      %v182 = vld [vmem:[%s169 + $0x20] sm:$0xff]
      %v183 = vld [vmem:[%s169 + $0x28] sm:$0xff]
      %v184 = vld [vmem:[%s169 + $0x30] sm:$0xff]
      %v185 = vld [vmem:[%s169 + $0x38] sm:$0xff]
      %v186 = vld [vmem:[%s169 + $0x40] sm:$0xff]
      %v187 = vld [vmem:[%s169 + $0x48] sm:$0xff]
      %v188 = vld [vmem:[%s169 + $0x50] sm:$0xff]
      %v189 = vld [vmem:[%s169 + $0x58] sm:$0xff]
      %v190 = vld [vmem:[%s169 + $0x60] sm:$0xff]
      %v191 = vld [vmem:[%s169 + $0x68] sm:$0xff]
      %v192 = vld [vmem:[%s169 + $0x70] sm:$0xff]
      %v193 = vld [vmem:[%s169 + $0x78] sm:$0xff]
      %v194 = vld [vmem:[%s169 + $0x80] sm:$0xff]
      %v195 = vld [vmem:[%s169 + $0x88] sm:$0xff]
      %v196 = vld [vmem:[%s169 + $0x90] sm:$0xff]
      %v197 = vld [vmem:[%s169 + $0x98] sm:$0xff]
      %v198 = vld [vmem:[%s169 + $0xa0] sm:$0xff]
      %v199 = vld [vmem:[%s169 + $0xa8] sm:$0xff]
      %v200 = vld [vmem:[%s169 + $0xb0] sm:$0xff]
      %v201 = vld [vmem:[%s169 + $0xb8] sm:$0xff]
      %v202 = vld [vmem:[%s169 + $0xc0] sm:$0xff]
      %v203 = vld [vmem:[%s169 + $0xc8] sm:$0xff]
      %v204 = vld [vmem:[%s169 + $0xd0] sm:$0xff]
      %v205 = vld [vmem:[%s169 + $0xd8] sm:$0xff]
      %v206 = vld [vmem:[%s169 + $0xe0] sm:$0xff]
      %v207 = vld [vmem:[%s169 + $0xe8] sm:$0xff]
      %v208 = vld [vmem:[%s169 + $0xf0] sm:$0xff]
      %v209 = vld [vmem:[%s169 + $0xf8] sm:$0xff]
      %v210 = vld [vmem:[%s169 + $0x100] sm:$0xff]
      %v211 = vld [vmem:[%s169 + $0x108] sm:$0xff]
      %v212 = vld [vmem:[%s169 + $0x110] sm:$0xff]
      %v213 = vld [vmem:[%s169 + $0x118] sm:$0xff]
      %v214 = vld [vmem:[%s169 + $0x120] sm:$0xff]
      %v215 = vld [vmem:[%s169 + $0x128] sm:$0xff]
      %v216 = vld [vmem:[%s169 + $0x130] sm:$0xff]
      %v217 = vld [vmem:[%s169 + $0x138] sm:$0xff]
      %v218 = vld [vmem:[%s169 + $0x140] sm:$0xff]
      %v219 = vld [vmem:[%s169 + $0x148] sm:$0xff]
      %v220 = vld [vmem:[%s169 + $0x150] sm:$0xff]
      %v221 = vld [vmem:[%s169 + $0x158] sm:$0xff]
      %v222 = vld [vmem:[%s169 + $0x160] sm:$0xff]
      %v223 = vld [vmem:[%s169 + $0x168] sm:$0xff]
      %v224 = vld [vmem:[%s169 + $0x170] sm:$0xff]
      %v225 = vld [vmem:[%s169 + $0x178] sm:$0xff]
      %v226 = vld [vmem:[%s169 + $0x180] sm:$0xff]
      %v227 = vld [vmem:[%s169 + $0x188] sm:$0xff]
      %v228 = vld [vmem:[%s169 + $0x190] sm:$0xff]
      %v229 = vld [vmem:[%s169 + $0x198] sm:$0xff]
      %v230 = vld [vmem:[%s169 + $0x1a0] sm:$0xff]
      %v231 = vld [vmem:[%s169 + $0x1a8] sm:$0xff]
      %v232 = vld [vmem:[%s169 + $0x1b0] sm:$0xff]
      %v233 = vld [vmem:[%s169 + $0x1b8] sm:$0xff]
      %v234 = vld [vmem:[%s169 + $0x1c0] sm:$0xff]
      %v235 = vld [vmem:[%s169 + $0x1c8] sm:$0xff]
      %v236 = vld [vmem:[%s169 + $0x1d0] sm:$0xff]
      %v237 = vld [vmem:[%s169 + $0x1d8] sm:$0xff]
      %v238 = vld [vmem:[%s169 + $0x1e0] sm:$0xff]
      %v239 = vld [vmem:[%s169 + $0x1e8] sm:$0xff]
      %v240 = vld [vmem:[%s169 + $0x1f0] sm:$0xff]
      %v241 = vld [vmem:[%s169 + $0x1f8] sm:$0xff]
      %v242 = vld [vmem:[%s1] sm:$0xf]
      %v243 = vld [vmem:[%s1 + $0x4] sm:$0xf]
      %v244 = vld [vmem:[%s1 + $0x8] sm:$0xf]
      %v245 = vld [vmem:[%s1 + $0xc] sm:$0xf]
      %v246 = vld [vmem:[%s1 + $0x10] sm:$0xf]
      %v247 = vld [vmem:[%s1 + $0x14] sm:$0xf]
      %v248 = vld [vmem:[%s1 + $0x18] sm:$0xf]
      %v249 = vld [vmem:[%s1 + $0x1c] sm:$0xf]
      %v250 = vld [vmem:[%s1 + $0x20] sm:$0xf]
      %v251 = vld [vmem:[%s1 + $0x24] sm:$0xf]
      %v252 = vld [vmem:[%s1 + $0x28] sm:$0xf]
      %v253 = vld [vmem:[%s1 + $0x2c] sm:$0xf]
      %v254 = vld [vmem:[%s1 + $0x30] sm:$0xf]
      %v255 = vld [vmem:[%s1 + $0x34] sm:$0xf]
      %v256 = vld [vmem:[%s1 + $0x38] sm:$0xf]
      %v257 = vld [vmem:[%s1 + $0x3c] sm:$0xf]
      %v258 = vld [vmem:[%s1 + $0x40] sm:$0xf]
      %v259 = vld [vmem:[%s1 + $0x44] sm:$0xf]
      %v260 = vld [vmem:[%s1 + $0x48] sm:$0xf]
      %v261 = vld [vmem:[%s1 + $0x4c] sm:$0xf]
      %v262 = vld [vmem:[%s1 + $0x50] sm:$0xf]
      %v263 = vld [vmem:[%s1 + $0x54] sm:$0xf]
      %v264 = vld [vmem:[%s1 + $0x58] sm:$0xf]
      %v265 = vld [vmem:[%s1 + $0x5c] sm:$0xf]
      %v266 = vld [vmem:[%s1 + $0x60] sm:$0xf]
      %v267 = vld [vmem:[%s1 + $0x64] sm:$0xf]
      %v268 = vld [vmem:[%s1 + $0x68] sm:$0xf]
      %v269 = vld [vmem:[%s1 + $0x6c] sm:$0xf]
      %v270 = vld [vmem:[%s1 + $0x70] sm:$0xf]
      %v271 = vld [vmem:[%s1 + $0x74] sm:$0xf]
      %v272 = vld [vmem:[%s1 + $0x78] sm:$0xf]
      %v273 = vld [vmem:[%s1 + $0x7c] sm:$0xf]
      %v274 = vld [vmem:[%s1 + $0x80] sm:$0xf]
      %v275 = vld [vmem:[%s1 + $0x84] sm:$0xf]
      %v276 = vld [vmem:[%s1 + $0x88] sm:$0xf]
      %v277 = vld [vmem:[%s1 + $0x8c] sm:$0xf]
      %v278 = vld [vmem:[%s1 + $0x90] sm:$0xf]
      %v279 = vld [vmem:[%s1 + $0x94] sm:$0xf]
      %v280 = vld [vmem:[%s1 + $0x98] sm:$0xf]
      %v281 = vld [vmem:[%s1 + $0x9c] sm:$0xf]
      %v282 = vld [vmem:[%s1 + $0xa0] sm:$0xf]
      %v283 = vld [vmem:[%s1 + $0xa4] sm:$0xf]
      %v284 = vld [vmem:[%s1 + $0xa8] sm:$0xf]
      %v285 = vld [vmem:[%s1 + $0xac] sm:$0xf]
      %v286 = vld [vmem:[%s1 + $0xb0] sm:$0xf]
      %v287 = vld [vmem:[%s1 + $0xb4] sm:$0xf]
      %v288 = vld [vmem:[%s1 + $0xb8] sm:$0xf]
      %v289 = vld [vmem:[%s1 + $0xbc] sm:$0xf]
      %v290 = vld [vmem:[%s1 + $0xc0] sm:$0xf]
      %v291 = vld [vmem:[%s1 + $0xc4] sm:$0xf]
      %v356 = vunpack.c.l.b16 %v178
      %v357 = vunpack.c.h.b16 %v178
      %v358 = vunpack.c.l.b16 %v179
      %v359 = vunpack.c.h.b16 %v179
      %v360 = vunpack.c.l.b16 %v180
      %v361 = vunpack.c.h.b16 %v180
      %v362 = vunpack.c.l.b16 %v181
      %v363 = vunpack.c.h.b16 %v181
      %v364 = vunpack.c.l.b16 %v182
      %v365 = vunpack.c.h.b16 %v182
      %v366 = vunpack.c.l.b16 %v183
      %v367 = vunpack.c.h.b16 %v183
      %v368 = vunpack.c.l.b16 %v184
      %v369 = vunpack.c.h.b16 %v184
      %v370 = vunpack.c.l.b16 %v185
      %v371 = vunpack.c.h.b16 %v185
      %v372 = vunpack.c.l.b16 %v186
      %v373 = vunpack.c.h.b16 %v186
      %v374 = vunpack.c.l.b16 %v187
      %v375 = vunpack.c.h.b16 %v187
      %v376 = vunpack.c.l.b16 %v188
      %v377 = vunpack.c.h.b16 %v188
      %v378 = vunpack.c.l.b16 %v189
      %v379 = vunpack.c.h.b16 %v189
      %v380 = vunpack.c.l.b16 %v190
      %v381 = vunpack.c.h.b16 %v190
      %v382 = vunpack.c.l.b16 %v191
      %v383 = vunpack.c.h.b16 %v191
      %v384 = vunpack.c.l.b16 %v192
      %v385 = vunpack.c.h.b16 %v192
      %v386 = vunpack.c.l.b16 %v193
      %v387 = vunpack.c.h.b16 %v193
      %v388 = vunpack.c.l.b16 %v194
      %v389 = vunpack.c.h.b16 %v194
      %v390 = vunpack.c.l.b16 %v195
      %v391 = vunpack.c.h.b16 %v195
      %v392 = vunpack.c.l.b16 %v196
      %v393 = vunpack.c.h.b16 %v196
      %v394 = vunpack.c.l.b16 %v197
      %v395 = vunpack.c.h.b16 %v197
      %v396 = vunpack.c.l.b16 %v198
      %v397 = vunpack.c.h.b16 %v198
      %v398 = vunpack.c.l.b16 %v199
      %v399 = vunpack.c.h.b16 %v199
      %v400 = vunpack.c.l.b16 %v200
      %v401 = vunpack.c.h.b16 %v200
      %v402 = vunpack.c.l.b16 %v201
      %v403 = vunpack.c.h.b16 %v201
      %v404 = vunpack.c.l.b16 %v202
      %v405 = vunpack.c.h.b16 %v202
      %v406 = vunpack.c.l.b16 %v203
      %v407 = vunpack.c.h.b16 %v203
      %v408 = vunpack.c.l.b16 %v204
      %v409 = vunpack.c.h.b16 %v204
      %v410 = vunpack.c.l.b16 %v205
      %v411 = vunpack.c.h.b16 %v205
      %v412 = vunpack.c.l.b16 %v206
      %v413 = vunpack.c.h.b16 %v206
      %v414 = vunpack.c.l.b16 %v207
      %v415 = vunpack.c.h.b16 %v207
      %v416 = vunpack.c.l.b16 %v208
      %v417 = vunpack.c.h.b16 %v208
      %v418 = vunpack.c.l.b16 %v209
      %v419 = vunpack.c.h.b16 %v209
      %v420 = vunpack.c.l.b16 %v210
      %v421 = vunpack.c.h.b16 %v210
      %v422 = vunpack.c.l.b16 %v211
      %v423 = vunpack.c.h.b16 %v211
      %v424 = vunpack.c.l.b16 %v212
      %v425 = vunpack.c.h.b16 %v212
      %v426 = vunpack.c.l.b16 %v213
      %v427 = vunpack.c.h.b16 %v213
      %v428 = vunpack.c.l.b16 %v214
      %v429 = vunpack.c.h.b16 %v214
      %v430 = vunpack.c.l.b16 %v215
      %v431 = vunpack.c.h.b16 %v215
      %v432 = vunpack.c.l.b16 %v216
      %v433 = vunpack.c.h.b16 %v216
      %v434 = vunpack.c.l.b16 %v217
      %v435 = vunpack.c.h.b16 %v217
      %v436 = vunpack.c.l.b16 %v218
      %v437 = vunpack.c.h.b16 %v218
      %v438 = vunpack.c.l.b16 %v219
      %v439 = vunpack.c.h.b16 %v219
      %v440 = vunpack.c.l.b16 %v220
      %v441 = vunpack.c.h.b16 %v220
      %v442 = vunpack.c.l.b16 %v221
      %v443 = vunpack.c.h.b16 %v221
      %v444 = vunpack.c.l.b16 %v222
      %v445 = vunpack.c.h.b16 %v222
      %v446 = vunpack.c.l.b16 %v223
      %v447 = vunpack.c.h.b16 %v223
      %v448 = vunpack.c.l.b16 %v224
      %v449 = vunpack.c.h.b16 %v224
      %v450 = vunpack.c.l.b16 %v225
      %v451 = vunpack.c.h.b16 %v225
      %v452 = vunpack.c.l.b16 %v226
      %v453 = vunpack.c.h.b16 %v226
      %v454 = vunpack.c.l.b16 %v227
      %v455 = vunpack.c.h.b16 %v227
      %v456 = vunpack.c.l.b16 %v228
      %v457 = vunpack.c.h.b16 %v228
      %v458 = vunpack.c.l.b16 %v229
      %v459 = vunpack.c.h.b16 %v229
      %v460 = vunpack.c.l.b16 %v230
      %v461 = vunpack.c.h.b16 %v230
      %v462 = vunpack.c.l.b16 %v231
      %v463 = vunpack.c.h.b16 %v231
      %v464 = vunpack.c.l.b16 %v232
      %v465 = vunpack.c.h.b16 %v232
      %v466 = vunpack.c.l.b16 %v233
      %v467 = vunpack.c.h.b16 %v233
      %v468 = vunpack.c.l.b16 %v234
      %v469 = vunpack.c.h.b16 %v234
      %v470 = vunpack.c.l.b16 %v235
      %v471 = vunpack.c.h.b16 %v235
      %v472 = vunpack.c.l.b16 %v236
      %v473 = vunpack.c.h.b16 %v236
      %v474 = vunpack.c.l.b16 %v237
      %v475 = vunpack.c.h.b16 %v237
      %v476 = vunpack.c.l.b16 %v238
      %v477 = vunpack.c.h.b16 %v238
      %v478 = vunpack.c.l.b16 %v239
      %v479 = vunpack.c.h.b16 %v239
      %v480 = vunpack.c.l.b16 %v240
      %v481 = vunpack.c.h.b16 %v240
      %v482 = vunpack.c.l.b16 %v241
      %v483 = vunpack.c.h.b16 %v241
      %v484 = vpack.c.b16 %v360, %v356
      %v485 = vpack.c.b16 %v361, %v357
      %v486 = vpack.c.b16 %v362, %v358
      %v487 = vpack.c.b16 %v363, %v359
      %v488 = vpack.c.b16 %v368, %v364
      %v489 = vpack.c.b16 %v369, %v365
      %v490 = vpack.c.b16 %v370, %v366
      %v491 = vpack.c.b16 %v371, %v367
      %v492 = vpack.c.b16 %v376, %v372
      %v493 = vpack.c.b16 %v377, %v373
      %v494 = vpack.c.b16 %v378, %v374
      %v495 = vpack.c.b16 %v379, %v375
      %v496 = vpack.c.b16 %v384, %v380
      %v497 = vpack.c.b16 %v385, %v381
      %v498 = vpack.c.b16 %v386, %v382
      %v499 = vpack.c.b16 %v387, %v383
      %v500 = vpack.c.b16 %v392, %v388
      %v501 = vpack.c.b16 %v393, %v389
      %v502 = vpack.c.b16 %v394, %v390
      %v503 = vpack.c.b16 %v395, %v391
      %v504 = vpack.c.b16 %v400, %v396
      %v505 = vpack.c.b16 %v401, %v397
      %v506 = vpack.c.b16 %v402, %v398
      %v507 = vpack.c.b16 %v403, %v399
      %v508 = vpack.c.b16 %v408, %v404
      %v509 = vpack.c.b16 %v409, %v405
      %v510 = vpack.c.b16 %v410, %v406
      %v511 = vpack.c.b16 %v411, %v407
      %v512 = vpack.c.b16 %v416, %v412
      %v513 = vpack.c.b16 %v417, %v413
      %v514 = vpack.c.b16 %v418, %v414
      %v515 = vpack.c.b16 %v419, %v415
      %v516 = vpack.c.b16 %v424, %v420
      %v517 = vpack.c.b16 %v425, %v421
      %v518 = vpack.c.b16 %v426, %v422
      %v519 = vpack.c.b16 %v427, %v423
      %v520 = vpack.c.b16 %v432, %v428
      %v521 = vpack.c.b16 %v433, %v429
      %v522 = vpack.c.b16 %v434, %v430
      %v523 = vpack.c.b16 %v435, %v431
      %v524 = vpack.c.b16 %v440, %v436
      %v525 = vpack.c.b16 %v441, %v437
      %v526 = vpack.c.b16 %v442, %v438
      %v527 = vpack.c.b16 %v443, %v439
      %v528 = vpack.c.b16 %v448, %v444
      %v529 = vpack.c.b16 %v449, %v445
      %v530 = vpack.c.b16 %v450, %v446
      %v531 = vpack.c.b16 %v451, %v447
      %v532 = vpack.c.b16 %v456, %v452
      %v533 = vpack.c.b16 %v457, %v453
      %v534 = vpack.c.b16 %v458, %v454
      %v535 = vpack.c.b16 %v459, %v455
      %v536 = vpack.c.b16 %v464, %v460
      %v537 = vpack.c.b16 %v465, %v461
      %v538 = vpack.c.b16 %v466, %v462
      %v539 = vpack.c.b16 %v467, %v463
      %v540 = vpack.c.b16 %v472, %v468
      %v541 = vpack.c.b16 %v473, %v469
      %v542 = vpack.c.b16 %v474, %v470
      %v543 = vpack.c.b16 %v475, %v471
      %v544 = vpack.c.b16 %v480, %v476
      %v545 = vpack.c.b16 %v481, %v477
      %v546 = vpack.c.b16 %v482, %v478
      %v547 = vpack.c.b16 %v483, %v479
      %v646 = vunpack.c.l.b16 %v242
      %v647 = vunpack.c.l.b16 %v243
      %v648 = vunpack.c.l.b16 %v244
      %v649 = vunpack.c.l.b16 %v245
      %v650 = vunpack.c.l.b16 %v246
      %v651 = vunpack.c.l.b16 %v247
      %v652 = vunpack.c.l.b16 %v248
      %v653 = vunpack.c.l.b16 %v249
      %v654 = vunpack.c.l.b16 %v250
      %v655 = vunpack.c.l.b16 %v251
      %v656 = vunpack.c.l.b16 %v252
      %v657 = vunpack.c.l.b16 %v253
      %v658 = vunpack.c.l.b16 %v254
      %v659 = vunpack.c.l.b16 %v255
      %v660 = vunpack.c.l.b16 %v256
      %v661 = vunpack.c.l.b16 %v257
      %v662 = vunpack.c.l.b16 %v258
      %v663 = vunpack.c.l.b16 %v259
      %v664 = vunpack.c.l.b16 %v260
      %v665 = vunpack.c.l.b16 %v261
      %v666 = vunpack.c.l.b16 %v262
      %v667 = vunpack.c.l.b16 %v263
      %v668 = vunpack.c.l.b16 %v264
      %v669 = vunpack.c.l.b16 %v265
      %v670 = vunpack.c.l.b16 %v266
      %v671 = vunpack.c.l.b16 %v267
      %v672 = vunpack.c.l.b16 %v268
      %v673 = vunpack.c.l.b16 %v269
      %v674 = vunpack.c.l.b16 %v270
      %v675 = vunpack.c.l.b16 %v271
      %v676 = vunpack.c.l.b16 %v272
      %v677 = vunpack.c.l.b16 %v273
      %v678 = vunpack.c.l.b16 %v274
      %v679 = vunpack.c.l.b16 %v275
      %v680 = vunpack.c.l.b16 %v276
      %v681 = vunpack.c.l.b16 %v277
      %v682 = vunpack.c.l.b16 %v278
      %v683 = vunpack.c.l.b16 %v279
      %v684 = vunpack.c.l.b16 %v280
      %v685 = vunpack.c.l.b16 %v281
      %v686 = vunpack.c.l.b16 %v282
      %v687 = vunpack.c.l.b16 %v283
      %v688 = vunpack.c.l.b16 %v284
      %v689 = vunpack.c.l.b16 %v285
      %v690 = vunpack.c.l.b16 %v286
      %v691 = vunpack.c.l.b16 %v287
      %v692 = vunpack.c.l.b16 %v288
      %v693 = vunpack.c.l.b16 %v289
      %v694 = vunpack.c.l.b16 %v290
      %v695 = vunpack.c.l.b16 %v291
      %v696 = vpack.c.b16 %v647, %v646
      %v697 = vpack.c.b16 %v649, %v648
      %v698 = vpack.c.b16 %v651, %v650
      %v699 = vpack.c.b16 %v653, %v652
      %v700 = vpack.c.b16 %v655, %v654
      %v701 = vpack.c.b16 %v657, %v656
      %v702 = vpack.c.b16 %v659, %v658
      %v703 = vpack.c.b16 %v661, %v660
      %v704 = vpack.c.b16 %v663, %v662
      %v705 = vpack.c.b16 %v665, %v664
      %v706 = vpack.c.b16 %v667, %v666
      %v707 = vpack.c.b16 %v669, %v668
      %v708 = vpack.c.b16 %v671, %v670
      %v709 = vpack.c.b16 %v673, %v672
      %v710 = vpack.c.b16 %v675, %v674
      %v711 = vpack.c.b16 %v677, %v676
      %v712 = vpack.c.b16 %v679, %v678
      %v713 = vpack.c.b16 %v681, %v680
      %v714 = vpack.c.b16 %v683, %v682
      %v715 = vpack.c.b16 %v685, %v684
      %v716 = vpack.c.b16 %v687, %v686
      %v717 = vpack.c.b16 %v689, %v688
      %v718 = vpack.c.b16 %v691, %v690
      %v719 = vpack.c.b16 %v693, %v692
      %v720 = vpack.c.b16 %v695, %v694
      %vm746 = vcmask 130048
      %v748 = vsel %vm746, %v487, 0
      %v751 = vsel %vm746, %v491, 0
      %v754 = vsel %vm746, %v495, 0
      %v757 = vsel %vm746, %v499, 0
      %v760 = vsel %vm746, %v503, 0
      %v763 = vsel %vm746, %v507, 0
      %v766 = vsel %vm746, %v511, 0
      %v769 = vsel %vm746, %v515, 0
      %v772 = vsel %vm746, %v519, 0
      %v775 = vsel %vm746, %v523, 0
      %v778 = vsel %vm746, %v527, 0
      %v781 = vsel %vm746, %v531, 0
      %v784 = vsel %vm746, %v535, 0
      %v787 = vsel %vm746, %v539, 0
      %v790 = vsel %vm746, %v543, 0
      %v793 = vsel %vm746, %v547, 0
      %795 = vmatprep.subr.bf16.mxu0 0
      %796 = vmatpush1.bf16.msra.mxu0 %v696
      %797 = vmatprep.subr.bf16.mxu0 0
      %798 = vmatpush1.bf16.msra.mxu0 %v697
      %799 = vmatprep.subr.bf16.mxu0 0
      %800 = vmatpush1.bf16.msra.mxu0 %v698
      %801 = vmatprep.subr.bf16.mxu0 0
      %802 = vmatpush1.bf16.msra.mxu0 %v699
      %803 = vmatprep.subr.bf16.mxu0 0
      %804 = vmatpush1.bf16.msra.mxu0 %v700
      %805 = vmatprep.subr.bf16.mxu0 0
      %806 = vmatpush1.bf16.msra.mxu0 %v701
      %807 = vmatprep.subr.bf16.mxu0 0
      %808 = vmatpush1.bf16.msra.mxu0 %v702
      %809 = vmatprep.subr.bf16.mxu0 0
      %810 = vmatpush1.bf16.msra.mxu0 %v703
      %811 = vmatprep.subr.bf16.mxu0 0
      %812 = vmatpush1.bf16.msra.mxu0 %v704
      %813 = vmatprep.subr.bf16.mxu0 0
      %814 = vmatpush1.bf16.msra.mxu0 %v705
      %815 = vmatprep.subr.bf16.mxu0 0
      %816 = vmatpush1.bf16.msra.mxu0 %v706
      %817 = vmatprep.subr.bf16.mxu0 0
      %818 = vmatpush1.bf16.msra.mxu0 %v707
      %819 = vmatprep.subr.bf16.mxu0 0
      %820 = vmatpush1.bf16.msra.mxu0 %v708
      %821 = vmatprep.subr.bf16.mxu0 0
      %822 = vmatpush1.bf16.msra.mxu0 %v709
      %823 = vmatprep.subr.bf16.mxu0 0
      %824 = vmatpush1.bf16.msra.mxu0 %v710
      %825 = vmatprep.subr.bf16.mxu0 0
      %826 = vmatpush1.bf16.msra.mxu0 %v711
      %827 = vmatprep.mubr.bf16.mxu0 %v485
      %828 = vmatmul.mubr.bf16.gmra.mrb[0].mxu0 %v484
      %v829 = vpop.f32.mrb[0].mxu0
      %v830 = vadd.f32 0.0, %v829
      %v831 = vpop.f32.mrb[0].mxu0
      %v832 = vpop.f32.mrb[0].mxu0
      %v833 = vadd.f32 0.0, %v832
      %v834 = vpop.f32.mrb[0].mxu0
      %835 = vmatprep.mubr.bf16.mxu0 %v489
      %836 = vmatmul.mubr.bf16.gmra.mrb[0].mxu0 %v488
      %v837 = vpop.f32.mrb[0].mxu0
      %v838 = vadd.f32 0.0, %v837
      %v839 = vpop.f32.mrb[0].mxu0
      %v840 = vpop.f32.mrb[0].mxu0
      %v841 = vadd.f32 0.0, %v840
      %v842 = vpop.f32.mrb[0].mxu0
      %843 = vmatprep.mubr.bf16.mxu0 %v493
      %844 = vmatmul.mubr.bf16.gmra.mrb[0].mxu0 %v492
      %v845 = vpop.f32.mrb[0].mxu0
      %v846 = vadd.f32 0.0, %v845
      %v847 = vpop.f32.mrb[0].mxu0
      %v848 = vpop.f32.mrb[0].mxu0
      %v849 = vadd.f32 0.0, %v848
      %v850 = vpop.f32.mrb[0].mxu0
      %851 = vmatprep.mubr.bf16.mxu0 %v497
      %852 = vmatmul.mubr.bf16.gmra.mrb[0].mxu0 %v496
      %v853 = vpop.f32.mrb[0].mxu0
      %v854 = vadd.f32 0.0, %v853
      %v855 = vpop.f32.mrb[0].mxu0
      %v856 = vpop.f32.mrb[0].mxu0
      %v857 = vadd.f32 0.0, %v856
      %v858 = vpop.f32.mrb[0].mxu0
      %859 = vmatprep.mubr.bf16.mxu0 %v501
      %860 = vmatmul.mubr.bf16.gmra.mrb[0].mxu0 %v500
      %v861 = vpop.f32.mrb[0].mxu0
      %v862 = vadd.f32 0.0, %v861
      %v863 = vpop.f32.mrb[0].mxu0
      %v864 = vpop.f32.mrb[0].mxu0
      %v865 = vadd.f32 0.0, %v864
      %v866 = vpop.f32.mrb[0].mxu0
      %867 = vmatprep.mubr.bf16.mxu0 %v505
      %868 = vmatmul.mubr.bf16.gmra.mrb[0].mxu0 %v504
      %v869 = vpop.f32.mrb[0].mxu0
      %v870 = vadd.f32 0.0, %v869
      %v871 = vpop.f32.mrb[0].mxu0
      %v872 = vpop.f32.mrb[0].mxu0
      %v873 = vadd.f32 0.0, %v872
      %v874 = vpop.f32.mrb[0].mxu0
      %875 = vmatprep.mubr.bf16.mxu0 %v509
      %876 = vmatmul.mubr.bf16.gmra.mrb[0].mxu0 %v508
      %v877 = vpop.f32.mrb[0].mxu0
      %v878 = vadd.f32 0.0, %v877
      %v879 = vpop.f32.mrb[0].mxu0
      %v880 = vpop.f32.mrb[0].mxu0
      %v881 = vadd.f32 0.0, %v880
      %v882 = vpop.f32.mrb[0].mxu0
      %883 = vmatprep.mubr.bf16.mxu0 %v513
      %884 = vmatmul.mubr.bf16.gmra.mrb[0].mxu0 %v512
      %v885 = vpop.f32.mrb[0].mxu0
      %v886 = vadd.f32 0.0, %v885
      %v887 = vpop.f32.mrb[0].mxu0
      %v888 = vpop.f32.mrb[0].mxu0
      %v889 = vadd.f32 0.0, %v888
      %v890 = vpop.f32.mrb[0].mxu0
      %891 = vmatprep.mubr.bf16.mxu0 %v517
      %892 = vmatmul.mubr.bf16.gmra.mrb[0].mxu0 %v516
      %v893 = vpop.f32.mrb[0].mxu0
      %v894 = vadd.f32 0.0, %v893
      %v895 = vpop.f32.mrb[0].mxu0
      %v896 = vpop.f32.mrb[0].mxu0
      %v897 = vadd.f32 0.0, %v896
      %v898 = vpop.f32.mrb[0].mxu0
      %899 = vmatprep.mubr.bf16.mxu0 %v521
      %900 = vmatmul.mubr.bf16.gmra.mrb[0].mxu0 %v520
      %v901 = vpop.f32.mrb[0].mxu0
      %v902 = vadd.f32 0.0, %v901
      %v903 = vpop.f32.mrb[0].mxu0
      %v904 = vpop.f32.mrb[0].mxu0
      %v905 = vadd.f32 0.0, %v904
      %v906 = vpop.f32.mrb[0].mxu0
      %907 = vmatprep.mubr.bf16.mxu0 %v525
      %908 = vmatmul.mubr.bf16.gmra.mrb[0].mxu0 %v524
      %v909 = vpop.f32.mrb[0].mxu0
      %v910 = vadd.f32 0.0, %v909
      %v911 = vpop.f32.mrb[0].mxu0
      %v912 = vpop.f32.mrb[0].mxu0
      %v913 = vadd.f32 0.0, %v912
      %v914 = vpop.f32.mrb[0].mxu0
      %915 = vmatprep.mubr.bf16.mxu0 %v529
      %916 = vmatmul.mubr.bf16.gmra.mrb[0].mxu0 %v528
      %v917 = vpop.f32.mrb[0].mxu0
      %v918 = vadd.f32 0.0, %v917
      %v919 = vpop.f32.mrb[0].mxu0
      %v920 = vpop.f32.mrb[0].mxu0
      %v921 = vadd.f32 0.0, %v920
      %v922 = vpop.f32.mrb[0].mxu0
      %923 = vmatprep.mubr.bf16.mxu0 %v533
      %924 = vmatmul.mubr.bf16.gmra.mrb[0].mxu0 %v532
      %v925 = vpop.f32.mrb[0].mxu0
      %v926 = vadd.f32 0.0, %v925
      %v927 = vpop.f32.mrb[0].mxu0
      %v928 = vpop.f32.mrb[0].mxu0
      %v929 = vadd.f32 0.0, %v928
      %v930 = vpop.f32.mrb[0].mxu0
      %931 = vmatprep.mubr.bf16.mxu0 %v537
      %932 = vmatmul.mubr.bf16.gmra.mrb[0].mxu0 %v536
      %v933 = vpop.f32.mrb[0].mxu0
      %v934 = vadd.f32 0.0, %v933
      %v935 = vpop.f32.mrb[0].mxu0
      %v936 = vpop.f32.mrb[0].mxu0
      %v937 = vadd.f32 0.0, %v936
      %v938 = vpop.f32.mrb[0].mxu0
      %939 = vmatprep.mubr.bf16.mxu0 %v541
      %940 = vmatmul.mubr.bf16.gmra.mrb[0].mxu0 %v540
      %v941 = vpop.f32.mrb[0].mxu0
      %v942 = vadd.f32 0.0, %v941
      %v943 = vpop.f32.mrb[0].mxu0
      %v944 = vpop.f32.mrb[0].mxu0
      %v945 = vadd.f32 0.0, %v944
      %v946 = vpop.f32.mrb[0].mxu0
      %947 = vmatprep.mubr.bf16.mxu0 %v545
      %948 = vmatmul.mubr.bf16.gmra.mrb[0].mxu0 %v544
      %v949 = vpop.f32.mrb[0].mxu0
      %v950 = vadd.f32 0.0, %v949
      %v951 = vpop.f32.mrb[0].mxu0
      %v952 = vpop.f32.mrb[0].mxu0
      %v953 = vadd.f32 0.0, %v952
      %v954 = vpop.f32.mrb[0].mxu0
      %955 = vdwg.mxu0
      %956 = vmatprep.subr.bf16.mxu0 0
      %957 = vmatpush1.bf16.msra.mxu0 %v712
      %958 = vmatprep.subr.bf16.mxu0 0
      %959 = vmatpush1.bf16.msra.mxu0 %v713
      %960 = vmatprep.subr.bf16.mxu0 0
      %961 = vmatpush1.bf16.msra.mxu0 %v714
      %962 = vmatprep.subr.bf16.mxu0 0
      %963 = vmatpush1.bf16.msra.mxu0 %v715
      %964 = vmatprep.subr.bf16.mxu0 0
      %965 = vmatpush1.bf16.msra.mxu0 %v716
      %966 = vmatprep.subr.bf16.mxu0 0
      %967 = vmatpush1.bf16.msra.mxu0 %v717
      %968 = vmatprep.subr.bf16.mxu0 0
      %969 = vmatpush1.bf16.msra.mxu0 %v718
      %970 = vmatprep.subr.bf16.mxu0 0
      %971 = vmatpush1.bf16.msra.mxu0 %v719
      %972 = vmatprep.subr.bf16.mxu0 0
      %973 = vmatpush1.bf16.msra.mxu0 %v720
      %974 = vmatprep.subr.bf16.mxu0 0
      %975 = vmatpush1.bf16.msra.mxu0 0
      %976 = vmatprep.subr.bf16.mxu0 0
      %977 = vmatpush1.bf16.msra.mxu0 0
      %978 = vmatprep.subr.bf16.mxu0 0
      %979 = vmatpush1.bf16.msra.mxu0 0
      %980 = vmatprep.subr.bf16.mxu0 0
      %981 = vmatpush1.bf16.msra.mxu0 0
      %982 = vmatprep.subr.bf16.mxu0 0
      %983 = vmatpush1.bf16.msra.mxu0 0
      %984 = vmatprep.subr.bf16.mxu0 0
      %985 = vmatpush1.bf16.msra.mxu0 0
      %986 = vmatprep.subr.bf16.mxu0 0
      %987 = vmatpush1.bf16.msra.mxu0 0
      %988 = vmatprep.mubr.bf16.mxu0 %v748
      %989 = vmatmul.mubr.bf16.gmra.mrb[0].mxu0 %v486
      %v990 = vpop.f32.mrb[0].mxu0
      %v991 = vadd.f32 %v830, %v990
      %v992 = vpop.f32.mrb[0].mxu0
      %v993 = vpop.f32.mrb[0].mxu0
      %v994 = vadd.f32 %v833, %v993
      %v995 = vpop.f32.mrb[0].mxu0
      %996 = vmatprep.mubr.bf16.mxu0 %v751
      %997 = vmatmul.mubr.bf16.gmra.mrb[0].mxu0 %v490
      %v998 = vpop.f32.mrb[0].mxu0
      %v999 = vadd.f32 %v838, %v998
      %v1000 = vpop.f32.mrb[0].mxu0
      %v1001 = vpop.f32.mrb[0].mxu0
      %v1002 = vadd.f32 %v841, %v1001
      %v1003 = vpop.f32.mrb[0].mxu0
      %1004 = vmatprep.mubr.bf16.mxu0 %v754
      %1005 = vmatmul.mubr.bf16.gmra.mrb[0].mxu0 %v494
      %v1006 = vpop.f32.mrb[0].mxu0
      %v1007 = vadd.f32 %v846, %v1006
      %v1008 = vpop.f32.mrb[0].mxu0
      %v1009 = vpop.f32.mrb[0].mxu0
      %v1010 = vadd.f32 %v849, %v1009
      %v1011 = vpop.f32.mrb[0].mxu0
      %1012 = vmatprep.mubr.bf16.mxu0 %v757
      %1013 = vmatmul.mubr.bf16.gmra.mrb[0].mxu0 %v498
      %v1014 = vpop.f32.mrb[0].mxu0
      %v1015 = vadd.f32 %v854, %v1014
      %v1016 = vpop.f32.mrb[0].mxu0
      %v1017 = vpop.f32.mrb[0].mxu0
      %v1018 = vadd.f32 %v857, %v1017
      %v1019 = vpop.f32.mrb[0].mxu0
      %1020 = vmatprep.mubr.bf16.mxu0 %v760
      %1021 = vmatmul.mubr.bf16.gmra.mrb[0].mxu0 %v502
      %v1022 = vpop.f32.mrb[0].mxu0
      %v1023 = vadd.f32 %v862, %v1022
      %v1024 = vpop.f32.mrb[0].mxu0
      %v1025 = vpop.f32.mrb[0].mxu0
      %v1026 = vadd.f32 %v865, %v1025
      %v1027 = vpop.f32.mrb[0].mxu0
      %1028 = vmatprep.mubr.bf16.mxu0 %v763
      %1029 = vmatmul.mubr.bf16.gmra.mrb[0].mxu0 %v506
      %v1030 = vpop.f32.mrb[0].mxu0
      %v1031 = vadd.f32 %v870, %v1030
      %v1032 = vpop.f32.mrb[0].mxu0
      %v1033 = vpop.f32.mrb[0].mxu0
      %v1034 = vadd.f32 %v873, %v1033
      %v1035 = vpop.f32.mrb[0].mxu0
      %1036 = vmatprep.mubr.bf16.mxu0 %v766
      %1037 = vmatmul.mubr.bf16.gmra.mrb[0].mxu0 %v510
      %v1038 = vpop.f32.mrb[0].mxu0
      %v1039 = vadd.f32 %v878, %v1038
      %v1040 = vpop.f32.mrb[0].mxu0
      %v1041 = vpop.f32.mrb[0].mxu0
      %v1042 = vadd.f32 %v881, %v1041
      %v1043 = vpop.f32.mrb[0].mxu0
      %1044 = vmatprep.mubr.bf16.mxu0 %v769
      %1045 = vmatmul.mubr.bf16.gmra.mrb[0].mxu0 %v514
      %v1046 = vpop.f32.mrb[0].mxu0
      %v1047 = vadd.f32 %v886, %v1046
      %v1048 = vpop.f32.mrb[0].mxu0
      %v1049 = vpop.f32.mrb[0].mxu0
      %v1050 = vadd.f32 %v889, %v1049
      %v1051 = vpop.f32.mrb[0].mxu0
      %1052 = vmatprep.mubr.bf16.mxu0 %v772
      %1053 = vmatmul.mubr.bf16.gmra.mrb[0].mxu0 %v518
      %v1054 = vpop.f32.mrb[0].mxu0
      %v1055 = vadd.f32 %v894, %v1054
      %v1056 = vpop.f32.mrb[0].mxu0
      %v1057 = vpop.f32.mrb[0].mxu0
      %v1058 = vadd.f32 %v897, %v1057
      %v1059 = vpop.f32.mrb[0].mxu0
      %1060 = vmatprep.mubr.bf16.mxu0 %v775
      %1061 = vmatmul.mubr.bf16.gmra.mrb[0].mxu0 %v522
      %v1062 = vpop.f32.mrb[0].mxu0
      %v1063 = vadd.f32 %v902, %v1062
      %v1064 = vpop.f32.mrb[0].mxu0
      %v1065 = vpop.f32.mrb[0].mxu0
      %v1066 = vadd.f32 %v905, %v1065
      %v1067 = vpop.f32.mrb[0].mxu0
      %1068 = vmatprep.mubr.bf16.mxu0 %v778
      %1069 = vmatmul.mubr.bf16.gmra.mrb[0].mxu0 %v526
      %v1070 = vpop.f32.mrb[0].mxu0
      %v1071 = vadd.f32 %v910, %v1070
      %v1072 = vpop.f32.mrb[0].mxu0
      %v1073 = vpop.f32.mrb[0].mxu0
      %v1074 = vadd.f32 %v913, %v1073
      %v1075 = vpop.f32.mrb[0].mxu0
      %1076 = vmatprep.mubr.bf16.mxu0 %v781
      %1077 = vmatmul.mubr.bf16.gmra.mrb[0].mxu0 %v530
      %v1078 = vpop.f32.mrb[0].mxu0
      %v1079 = vadd.f32 %v918, %v1078
      %v1080 = vpop.f32.mrb[0].mxu0
      %v1081 = vpop.f32.mrb[0].mxu0
      %v1082 = vadd.f32 %v921, %v1081
      %v1083 = vpop.f32.mrb[0].mxu0
      %1084 = vmatprep.mubr.bf16.mxu0 %v784
      %1085 = vmatmul.mubr.bf16.gmra.mrb[0].mxu0 %v534
      %v1086 = vpop.f32.mrb[0].mxu0
      %v1087 = vadd.f32 %v926, %v1086
      %v1088 = vpop.f32.mrb[0].mxu0
      %v1089 = vpop.f32.mrb[0].mxu0
      %v1090 = vadd.f32 %v929, %v1089
      %v1091 = vpop.f32.mrb[0].mxu0
      %1092 = vmatprep.mubr.bf16.mxu0 %v787
      %1093 = vmatmul.mubr.bf16.gmra.mrb[0].mxu0 %v538
      %v1094 = vpop.f32.mrb[0].mxu0
      %v1095 = vadd.f32 %v934, %v1094
      %v1096 = vpop.f32.mrb[0].mxu0
      %v1097 = vpop.f32.mrb[0].mxu0
      %v1098 = vadd.f32 %v937, %v1097
      %v1099 = vpop.f32.mrb[0].mxu0
      %1100 = vmatprep.mubr.bf16.mxu0 %v790
      %1101 = vmatmul.mubr.bf16.gmra.mrb[0].mxu0 %v542
      %v1102 = vpop.f32.mrb[0].mxu0
      %v1103 = vadd.f32 %v942, %v1102
      %v1104 = vpop.f32.mrb[0].mxu0
      %v1105 = vpop.f32.mrb[0].mxu0
      %v1106 = vadd.f32 %v945, %v1105
      %v1107 = vpop.f32.mrb[0].mxu0
      %1108 = vmatprep.mubr.bf16.mxu0 %v793
      %1109 = vmatmul.mubr.bf16.gmra.mrb[0].mxu0 %v546
      %v1110 = vpop.f32.mrb[0].mxu0
      %v1111 = vadd.f32 %v950, %v1110
      %v1112 = vpop.f32.mrb[0].mxu0
      %v1113 = vpop.f32.mrb[0].mxu0
      %v1114 = vadd.f32 %v953, %v1113
      %v1115 = vpop.f32.mrb[0].mxu0
      %1116 = vdwg.mxu0
      %v1117 = vmax.f32 %v991, %v1023
      %v1118 = vmax.f32 %v994, %v1026
      %v1119 = vmax.f32 %v999, %v1031
      %v1120 = vmax.f32 %v1002, %v1034
      %v1121 = vmax.f32 %v1007, %v1039
      %v1122 = vmax.f32 %v1010, %v1042
      %v1123 = vmax.f32 %v1015, %v1047
      %v1124 = vmax.f32 %v1018, %v1050
      %v1125 = vmax.f32 %v1055, %v1087
      %v1126 = vmax.f32 %v1058, %v1090
      %v1127 = vmax.f32 %v1063, %v1095
      %v1128 = vmax.f32 %v1066, %v1098
      %v1129 = vmax.f32 %v1071, %v1103
      %v1130 = vmax.f32 %v1074, %v1106
      %v1131 = vmax.f32 %v1079, %v1111
      %v1132 = vmax.f32 %v1082, %v1114
      %v1133 = vmax.f32 %v1117, %v1125
      %v1134 = vmax.f32 %v1118, %v1126
      %v1135 = vmax.f32 %v1119, %v1127
      %v1136 = vmax.f32 %v1120, %v1128
      %v1137 = vmax.f32 %v1121, %v1129
      %v1138 = vmax.f32 %v1122, %v1130
      %v1139 = vmax.f32 %v1123, %v1131
      %v1140 = vmax.f32 %v1124, %v1132
      %v1141 = vld [vmem:[%s2] sm:$0x1]
      %v1143 = vlaneseq
      %v1144 = vshrl.u32 %v1143, 7
      %v1145 = vsub.s32 0, %v1144
      %v1146 = vrot.slane %v1141, %v1145
      %v1148 = vadd.f32 %v1133, %v1146
      %v1149 = vadd.f32 %v1134, %v1146
      %v1150 = vadd.f32 %v1135, %v1146
      %v1151 = vadd.f32 %v1136, %v1146
      %v1152 = vadd.f32 %v1137, %v1146
      %v1153 = vadd.f32 %v1138, %v1146
      %v1154 = vadd.f32 %v1139, %v1146
      %v1155 = vadd.f32 %v1140, %v1146
      %v1156 = vmax.f32 %v1148, 0.0
      %v1157 = vmax.f32 %v1149, 0.0
      %v1158 = vmax.f32 %v1150, 0.0
      %v1159 = vmax.f32 %v1151, 0.0
      %v1160 = vmax.f32 %v1152, 0.0
      %v1161 = vmax.f32 %v1153, 0.0
      %v1162 = vmax.f32 %v1154, 0.0
      %v1163 = vmax.f32 %v1155, 0.0
      %1164 = vst [vmem:[%s175] sm:$0xff] %v1156
      %1165 = vst [vmem:[%s175 + $0x8] sm:$0xff] %v1157
      %1166 = vst [vmem:[%s175 + $0x10] sm:$0xff] %v1158
      %1167 = vst [vmem:[%s175 + $0x18] sm:$0xff] %v1159
      %1168 = vst [vmem:[%s175 + $0x20] sm:$0xff] %v1160
      %1169 = vst [vmem:[%s175 + $0x28] sm:$0xff] %v1161
      %1170 = vst [vmem:[%s175 + $0x30] sm:$0xff] %v1162
      %1171 = vst [vmem:[%s175 + $0x38] sm:$0xff] %v1163
      %s1172 = smul.u32 8, %s14
      %p1173 = scmp.lt.s32.totalorder %s1172, 15
      %s1174 = scalar_select %p1173, %s1172, 15
      %s1175 = smul.addr %s1174, 8
      %s1176 = scalar_lea.vmem %s3, %s1175
      // Predicated region
      $region33: #{cnn_forward.3} parent=31 // pred_check
        %p1177 = pneg %p100
      $region34: #{cnn_forward.3} parent=31 // pred_check_branch
        %1179 = sbr.rel (%p1177) target = $region36
      $region35: #{cnn_forward.3} parent=31 // pred_region
        %s1180 = smul.u32 8, %s14
      $region36: #{cnn_forward.3} parent=31 // pred_fallthru
        _
    $region32: #{cnn_forward.3} parent=5 // pred_fallthru
      _
    %p1181 = scmp.le.s32.totalorder 2, %s9
    // Predicated region
    $region37: #{cnn_forward.3} parent=5 // pred_check
      %p1182 = pneg %p1181
    $region38: #{cnn_forward.3} parent=5 // pred_check_branch
      %1184 = sbr.rel (%p1182) target = $region40
    $region39: #{cnn_forward.3} parent=5 // pred_region
      %s1185 = ssub.s32 %s9, 2
      // Predicated region
      $region41: #{cnn_forward.3} parent=39 // pred_check
        %p1186 = pneg %p106
      $region42: #{cnn_forward.3} parent=39 // pred_check_branch
        %1188 = sbr.rel (%p1186) target = $region44
      $region43: #{cnn_forward.3} parent=39 // pred_region
        %s1189 = smul.u32 8, %s15
        %p1190 = scmp.lt.s32.totalorder %s1189, 15
        %s1191 = scalar_select %p1190, %s1189, 15
        %s1192 = smul.addr %s1191, 8
        %s1193 = scalar_lea.vmem %s3, %s1192
      $region44: #{cnn_forward.3} parent=39 // pred_fallthru
        _
    $region40: #{cnn_forward.3} parent=5 // pred_fallthru
      _
  $region6: #{cnn_forward.3} parent=0 // loop_footer
    %s13 = sadd.s32 1, %s9
  $region7: #{cnn_forward.3} parent=0 // loop_footer_branch
    %8 = sbr.rel target = $region3
  $region8: #{cnn_forward.3} parent=0 // loop_exit
    _

</llo_original>
